<compile_context>
chip_gen: v7x
topology: tpu7x:2x2x1
jax: 0.10.0
libtpu: 0.0.40
codegen_flags: <defaults>
</compile_context>

<pallas_src>
import functools

import jax
import jax.numpy as jnp
from jax import lax
from jax.experimental import pallas as pl
from jax.experimental.pallas import tpu as pltpu

_BN_EPS = 1e-5

# Row layout of the packed per-channel vector slab `vec`:
#   rows [0, 9)   : gamma for BN layers (fc1, fc2, fc3, fc5, fc6, fc7, fc9, fc10, fc11)
#   rows [9, 18)  : beta  for the same BN layers, same order
#   rows [18, 21) : bias  for the three output Linears (fc4, fc8, fc12)
#   rows [21, 24) : zero padding (sublane alignment)
_GAMMA0 = 0
_BETA0 = 9
_OBIAS0 = 18
_VEC_ROWS = 24


def _round_up(n, m):
    return ((n + m - 1) // m) * m


# ----------------------------------------------------------------------------
# Fused whole-network kernel
# ----------------------------------------------------------------------------
def _net_kernel(x_ref, wx_ref, wh_ref, vec_ref, o_ref):
    """Whole Net forward in one kernel.

    x_ref  : (B, n_feature)        raw input
    wx_ref : (n_feature, 3*P)      fused raw-x weights [fc1 | fc5_bot | fc9_bot]
    wh_ref : (11, KH, P)           K-unpadded weights for hidden consumers:
                                   fc2, fc3, fc4, fc5_top, fc6, fc7, fc8,
                                   fc9_top, fc10, fc11, fc12
    vec_ref: (24, P)               gamma/beta/output-bias slab (see layout above)
    o_ref  : (3, B, P)             padded x1, x2, x3 (valid cols = n_output)
    """
    P = o_ref.shape[-1]
    KH = wh_ref.shape[1]

    x = x_ref[...]                                                   # (B, F)
    # One fused matmul for every raw-x consumer; the fc5_bot/fc9_bot pieces
    # finish while branch 1 runs (off the dependent chain).
    xb = jnp.dot(x, wx_ref[...], preferred_element_type=jnp.float32)  # (B, 3P)

    def gamma(j):
        return vec_ref[_GAMMA0 + j:_GAMMA0 + j + 1, :]               # (1, P)

    def beta(j):
        return vec_ref[_BETA0 + j:_BETA0 + j + 1, :]                 # (1, P)

    def obias(j):
        return vec_ref[_OBIAS0 + j:_OBIAS0 + j + 1, :]               # (1, P)

    def dot_h(h, k):
        # Weights are K-unpadded: contract only the first KH lanes of h
        # (offset-0 static lane slice; lanes >= KH are zero anyway).
        return jnp.dot(h[:, :KH], wh_ref[k], preferred_element_type=jnp.float32)

    def bn_relu(y, j):
        # BatchNorm1d train-mode batch statistics, pre-Linear biases already
        # dropped (BN is shift-invariant). One-pass stats with clamped var.
        # TODO(synk): switch to two-pass variance if tolerances ever tighten
        # (one-pass E[y^2]-mean^2 can cancel catastrophically for large means).
        mean = jnp.mean(y, axis=0, keepdims=True)
        msq = jnp.mean(y * y, axis=0, keepdims=True)
        var = jnp.maximum(msq - mean * mean, 0.0)
        scale = gamma(j) * lax.rsqrt(var + _BN_EPS)   # (1, P) stat-width ops
        shift = beta(j) - mean * scale                # (1, P)
        return jnp.maximum(y * scale + shift, 0.0)    # 3 full-width VPU ops

    # ---- Branch 1: fc1 -> fc2 -> fc3 -> fc4 ----
    h = bn_relu(xb[:, 0:P], 0)                          # fc1 (bias folded out)
    h = bn_relu(dot_h(h, 0), 1)                         # fc2
    h = bn_relu(dot_h(h, 1), 2)                         # fc3
    x1 = dot_h(h, 2) + obias(0)                         # fc4  (padded to P cols)
    o_ref[0, :, :] = x1

    # ---- Branch 2: concat(x1, x) folded into split matmul ----
    h = bn_relu(dot_h(x1, 3) + xb[:, P:2 * P], 3)       # fc5 = x1@W_top + x@W_bot
    h = bn_relu(dot_h(h, 4), 4)                         # fc6
    h = bn_relu(dot_h(h, 5), 5)                         # fc7
    x2 = dot_h(h, 6) + obias(1)                         # fc8
    o_ref[1, :, :] = x2

    # ---- Branch 3: concat(x2, x) folded into split matmul ----
    h = bn_relu(dot_h(x2, 7) + xb[:, 2 * P:3 * P], 6)   # fc9 = x2@W_top + x@W_bot
    h = bn_relu(dot_h(h, 8), 7)                         # fc10
    h = bn_relu(dot_h(h, 9), 8)                         # fc11
    x3 = dot_h(h, 10) + obias(2)                        # fc12
    o_ref[2, :, :] = x3


# ----------------------------------------------------------------------------
# Single jitted forward wrapping one pallas_call
# ----------------------------------------------------------------------------
@functools.partial(jax.jit, static_argnames=("n_output",))
def net_forward(w_x, w_h, vec, x, *, n_output):
    B = x.shape[0]
    P = w_h.shape[-1]
    out = pl.pallas_call(
        _net_kernel,
        out_shape=jax.ShapeDtypeStruct((3, B, P), jnp.float32),
        grid=(1,),
        in_specs=[
            pl.BlockSpec(x.shape, lambda i: (0, 0)),
            pl.BlockSpec(w_x.shape, lambda i: (0, 0)),
            pl.BlockSpec(w_h.shape, lambda i: (0, 0, 0)),
            pl.BlockSpec(vec.shape, lambda i: (0, 0)),
        ],
        out_specs=pl.BlockSpec((3, B, P), lambda i: (0, 0, 0)),
        compiler_params=pltpu.CompilerParams(
            dimension_semantics=("arbitrary",)),
    )(x, w_x, w_h, vec)
    return (out[0, :, :n_output], out[1, :, :n_output], out[2, :, :n_output])


# ----------------------------------------------------------------------------
# Parameter construction (PyTorch-default-style init) and packing
# ----------------------------------------------------------------------------
def _init_linear(key, fan_in, fan_out):
    """PyTorch nn.Linear default: U(-1/sqrt(fan_in), 1/sqrt(fan_in))."""
    kw, kb = jax.random.split(key)
    bound = 1.0 / jnp.sqrt(jnp.float32(fan_in))
    w = jax.random.uniform(kw, (fan_in, fan_out), jnp.float32, -bound, bound)
    b = jax.random.uniform(kb, (1, fan_out), jnp.float32, -bound, bound)
    return w, b


def _init_bn(fan_out):
    """PyTorch BatchNorm1d default: gamma=1, beta=0."""
    return jnp.ones((1, fan_out), jnp.float32), jnp.zeros((1, fan_out), jnp.float32)


def init_net_params(key, n_feature, n_hidden, n_output):
    layer_dims = [
        (n_feature, n_hidden, True),             # fc1
        (n_hidden, n_hidden, True),              # fc2
        (n_hidden, n_hidden, True),              # fc3
        (n_hidden, n_output, False),             # fc4
        (n_output + n_feature, n_hidden, True),  # fc5
        (n_hidden, n_hidden, True),              # fc6
        (n_hidden, n_hidden, True),              # fc7
        (n_hidden, n_output, False),             # fc8
        (n_output + n_feature, n_hidden, True),  # fc9
        (n_hidden, n_hidden, True),              # fc10
        (n_hidden, n_hidden, True),              # fc11
        (n_hidden, n_output, False),             # fc12
    ]
    params = {}
    keys = jax.random.split(key, len(layer_dims))
    for idx, ((fi, fo, has_bn), k) in enumerate(zip(layer_dims, keys), start=1):
        w, b = _init_linear(k, fi, fo)
        entry = {"w": w, "b": b}
        if has_bn:
            g, beta = _init_bn(fo)
            entry["gamma"] = g
            entry["beta"] = beta
        params[f"fc{idx}"] = entry
    return params


def _pad2(a, rows, cols):
    return jnp.zeros((rows, cols), jnp.float32).at[: a.shape[0], : a.shape[1]].set(a)


def _padvec(v, cols):
    v = v.reshape(-1)
    return jnp.zeros((cols,), jnp.float32).at[: v.shape[0]].set(v)


def pack_params(params, n_feature, n_hidden, n_output):
    """Pack per-layer params into 3 lane-dense slabs for the fused kernel."""
    P = _round_up(max(n_hidden, n_output), 128)   # lane (output) width
    KH = _round_up(max(n_hidden, n_output), 8)    # K-unpadded contraction width

    def w(name):
        return params[name]["w"]

    # Fused raw-x weights: [fc1 | fc5_bot | fc9_bot] concatenated along lanes.
    # Pre-BN biases are dropped (BN shift-invariance), so no bias rows here.
    w_x = jnp.concatenate([
        _pad2(w("fc1"), n_feature, P),
        _pad2(w("fc5")[n_output:, :], n_feature, P),
        _pad2(w("fc9")[n_output:, :], n_feature, P),
    ], axis=1)                                                # (n_feature, 3P)

    # Weights applied to hidden/padded activations, K padded only to 8-sublane
    # multiples (not 128): (11, KH, P) instead of (11, 128, 128).
    w_h = jnp.stack([
        _pad2(w("fc2"), KH, P),
        _pad2(w("fc3"), KH, P),
        _pad2(w("fc4"), KH, P),
        _pad2(w("fc5")[:n_output, :], KH, P),   # fc5 top half (consumes x1)
        _pad2(w("fc6"), KH, P),
        _pad2(w("fc7"), KH, P),
        _pad2(w("fc8"), KH, P),
        _pad2(w("fc9")[:n_output, :], KH, P),   # fc9 top half (consumes x2)
        _pad2(w("fc10"), KH, P),
        _pad2(w("fc11"), KH, P),
        _pad2(w("fc12"), KH, P),
    ])                                                        # (11, KH, P)

    # Per-channel vector slab: 9 gammas, 9 betas, 3 output biases, zero pad.
    bn_layers = ["fc1", "fc2", "fc3", "fc5", "fc6", "fc7", "fc9", "fc10", "fc11"]
    rows = [_padvec(params[n]["gamma"], P) for n in bn_layers]
    rows += [_padvec(params[n]["beta"], P) for n in bn_layers]
    rows += [_padvec(params[n]["b"], P) for n in ("fc4", "fc8", "fc12")]
    while len(rows) < _VEC_ROWS:
        rows.append(jnp.zeros((P,), jnp.float32))
    vec = jnp.stack(rows)                                     # (24, P)

    return w_x, w_h, vec


# ----------------------------------------------------------------------------
# Pure-JAX reference for correctness checking (full biases, two-pass variance)
# ----------------------------------------------------------------------------
def _ref_block(p, h):
    y = h @ p["w"] + p["b"]
    mean = jnp.mean(y, axis=0, keepdims=True)
    var = jnp.mean((y - mean) ** 2, axis=0, keepdims=True)
    y = (y - mean) / jnp.sqrt(var + _BN_EPS) * p["gamma"] + p["beta"]
    return jnp.maximum(y, 0.0)


def _ref_forward(params, x):
    x1 = _ref_block(params["fc1"], x)
    x1 = _ref_block(params["fc2"], x1)
    x1 = _ref_block(params["fc3"], x1)
    x1 = x1 @ params["fc4"]["w"] + params["fc4"]["b"]
    x2 = jnp.concatenate((x1, x), axis=1)
    x2 = _ref_block(params["fc5"], x2)
    x2 = _ref_block(params["fc6"], x2)
    x2 = _ref_block(params["fc7"], x2)
    x2 = x2 @ params["fc8"]["w"] + params["fc8"]["b"]
    x3 = jnp.concatenate((x2, x), axis=1)
    x3 = _ref_block(params["fc9"], x3)
    x3 = _ref_block(params["fc10"], x3)
    x3 = _ref_block(params["fc11"], x3)
    x3 = x3 @ params["fc12"]["w"] + params["fc12"]["b"]
    return x1, x2, x3


# ----------------------------------------------------------------------------
# Main
# ----------------------------------------------------------------------------
if __name__ == "__main__":
    n_feature, n_hidden, n_output = 16, 32, 4
    batch = 8

    key = jax.random.PRNGKey(0)
    k_params, k_x = jax.random.split(key)

    params = init_net_params(k_params, n_feature, n_hidden, n_output)
    w_x, w_h, vec = pack_params(params, n_feature, n_hidden, n_output)
    x = jax.random.normal(k_x, (batch, n_feature), jnp.float32)

    x1, x2, x3 = net_forward(w_x, w_h, vec, x, n_output=n_output)
    jax.block_until_ready((x1, x2, x3))

    r1, r2, r3 = _ref_forward(params, x)
    assert x1.shape == (batch, n_output)
    assert x2.shape == (batch, n_output)
    assert x3.shape == (batch, n_output)
    assert jnp.allclose(x1, r1, atol=5e-4, rtol=5e-4)
    assert jnp.allclose(x2, r2, atol=5e-4, rtol=5e-4)
    assert jnp.allclose(x3, r3, atol=5e-4, rtol=5e-4)

    # NOTE: matches PyTorch train-mode forward; running_mean/var are not tracked.
    print("KERNEL_OK")
</pallas_src>

<mosaic_0001>
module attributes {stable_mosaic.version = 11 : i64} {
  func.func @_net_kernel(%arg0: i32, %arg1: memref<8x16xf32, #tpu.memory_space<vmem>>, %arg2: memref<16x384xf32, #tpu.memory_space<vmem>>, %arg3: memref<11x32x128xf32, #tpu.memory_space<vmem>>, %arg4: memref<24x128xf32, #tpu.memory_space<vmem>>, %arg5: memref<3x8x128xf32, #tpu.memory_space<vmem>>) attributes {dimension_semantics = [#tpu.dimension_semantics<arbitrary>], iteration_bounds = array<i64: 1>, scalar_prefetch = 0 : i64, scratch_operands = 0 : i64, tpu.core_type = #tpu.core_type<tc>, window_params = [{pipeline_mode = #tpu.pipeline_mode<synchronous>, transform_indices = @transform_0, window_bounds = array<i64: 8, 16>}, {pipeline_mode = #tpu.pipeline_mode<synchronous>, transform_indices = @transform_1, window_bounds = array<i64: 16, 384>}, {pipeline_mode = #tpu.pipeline_mode<synchronous>, transform_indices = @transform_2, window_bounds = array<i64: 11, 32, 128>}, {pipeline_mode = #tpu.pipeline_mode<synchronous>, transform_indices = @transform_3, window_bounds = array<i64: 24, 128>}, {pipeline_mode = #tpu.pipeline_mode<synchronous>, transform_indices = @transform_4, window_bounds = array<i64: 3, 8, 128>}]} {
    %c0 = arith.constant 0 : index
    %c0_0 = arith.constant 0 : index
    %0 = vector.load %arg1[%c0, %c0_0] : memref<8x16xf32, #tpu.memory_space<vmem>>, vector<8x16xf32>
    %c0_1 = arith.constant 0 : index
    %c0_2 = arith.constant 0 : index
    %1 = vector.load %arg2[%c0_1, %c0_2] : memref<16x384xf32, #tpu.memory_space<vmem>>, vector<16x384xf32>
    %cst = arith.constant dense<0.000000e+00> : vector<8x384xf32>
    %2 = tpu.matmul %0, %1, %cst {dimension_numbers = #tpu.dot_dimension_numbers<[1], [0], [0], [1], [0, 0, 1, 1], [], []>} : vector<8x16xf32>, vector<16x384xf32>, vector<8x384xf32> -> vector<8x384xf32>
    %3 = vector.extract_strided_slice %2 {offsets = [0, 0], sizes = [8, 128], strides = [1, 1]} : vector<8x384xf32> to vector<8x128xf32>
    %cst_3 = arith.constant dense<0.000000e+00> : vector<128xf32>
    %4 = vector.multi_reduction <add>, %3, %cst_3 [0] : vector<8x128xf32> to vector<128xf32>
    %5 = vector.shape_cast %4 : vector<128xf32> to vector<1x128xf32>
    %cst_4 = arith.constant 8.000000e+00 : f32
    %6 = vector.broadcast %cst_4 : f32 to vector<1x128xf32>
    %7 = arith.divf %5, %6 : vector<1x128xf32>
    %8 = arith.mulf %3, %3 : vector<8x128xf32>
    %cst_5 = arith.constant dense<0.000000e+00> : vector<128xf32>
    %9 = vector.multi_reduction <add>, %8, %cst_5 [0] : vector<8x128xf32> to vector<128xf32>
    %10 = vector.shape_cast %9 : vector<128xf32> to vector<1x128xf32>
    %cst_6 = arith.constant 8.000000e+00 : f32
    %11 = vector.broadcast %cst_6 : f32 to vector<1x128xf32>
    %12 = arith.divf %10, %11 : vector<1x128xf32>
    %13 = arith.mulf %7, %7 : vector<1x128xf32>
    %14 = arith.subf %12, %13 : vector<1x128xf32>
    %cst_7 = arith.constant 0.000000e+00 : f32
    %15 = vector.broadcast %cst_7 : f32 to vector<1x128xf32>
    %16 = arith.maximumf %14, %15 : vector<1x128xf32>
    %c0_8 = arith.constant 0 : index
    %c0_9 = arith.constant 0 : index
    %17 = vector.load %arg4[%c0_8, %c0_9] : memref<24x128xf32, #tpu.memory_space<vmem>>, vector<1x128xf32>
    %cst_10 = arith.constant 9.99999974E-6 : f32
    %18 = vector.broadcast %cst_10 : f32 to vector<1x128xf32>
    %19 = arith.addf %16, %18 : vector<1x128xf32>
    %20 = math.rsqrt %19 : vector<1x128xf32>
    %21 = arith.mulf %17, %20 : vector<1x128xf32>
    %c9 = arith.constant 9 : index
    %c0_11 = arith.constant 0 : index
    %22 = vector.load %arg4[%c9, %c0_11] : memref<24x128xf32, #tpu.memory_space<vmem>>, vector<1x128xf32>
    %23 = arith.mulf %7, %21 : vector<1x128xf32>
    %24 = arith.subf %22, %23 : vector<1x128xf32>
    %25 = vector.broadcast %21 : vector<1x128xf32> to vector<8x128xf32>
    %26 = arith.mulf %3, %25 : vector<8x128xf32>
    %27 = vector.broadcast %24 : vector<1x128xf32> to vector<8x128xf32>
    %28 = arith.addf %26, %27 : vector<8x128xf32>
    %cst_12 = arith.constant 0.000000e+00 : f32
    %29 = vector.broadcast %cst_12 : f32 to vector<8x128xf32>
    %30 = arith.maximumf %28, %29 : vector<8x128xf32>
    %31 = vector.extract_strided_slice %30 {offsets = [0, 0], sizes = [8, 32], strides = [1, 1]} : vector<8x128xf32> to vector<8x32xf32>
    %c0_13 = arith.constant 0 : index
    %c0_14 = arith.constant 0 : index
    %c0_15 = arith.constant 0 : index
    %32 = vector.load %arg3[%c0_13, %c0_14, %c0_15] : memref<11x32x128xf32, #tpu.memory_space<vmem>>, vector<1x32x128xf32>
    %33 = vector.shape_cast %32 : vector<1x32x128xf32> to vector<32x128xf32>
    %cst_16 = arith.constant dense<0.000000e+00> : vector<8x128xf32>
    %34 = tpu.matmul %31, %33, %cst_16 {dimension_numbers = #tpu.dot_dimension_numbers<[1], [0], [0], [1], [0, 0, 1, 1], [], []>} : vector<8x32xf32>, vector<32x128xf32>, vector<8x128xf32> -> vector<8x128xf32>
    %cst_17 = arith.constant dense<0.000000e+00> : vector<128xf32>
    %35 = vector.multi_reduction <add>, %34, %cst_17 [0] : vector<8x128xf32> to vector<128xf32>
    %36 = vector.shape_cast %35 : vector<128xf32> to vector<1x128xf32>
    %cst_18 = arith.constant 8.000000e+00 : f32
    %37 = vector.broadcast %cst_18 : f32 to vector<1x128xf32>
    %38 = arith.divf %36, %37 : vector<1x128xf32>
    %39 = arith.mulf %34, %34 : vector<8x128xf32>
    %cst_19 = arith.constant dense<0.000000e+00> : vector<128xf32>
    %40 = vector.multi_reduction <add>, %39, %cst_19 [0] : vector<8x128xf32> to vector<128xf32>
    %41 = vector.shape_cast %40 : vector<128xf32> to vector<1x128xf32>
    %cst_20 = arith.constant 8.000000e+00 : f32
    %42 = vector.broadcast %cst_20 : f32 to vector<1x128xf32>
    %43 = arith.divf %41, %42 : vector<1x128xf32>
    %44 = arith.mulf %38, %38 : vector<1x128xf32>
    %45 = arith.subf %43, %44 : vector<1x128xf32>
    %cst_21 = arith.constant 0.000000e+00 : f32
    %46 = vector.broadcast %cst_21 : f32 to vector<1x128xf32>
    %47 = arith.maximumf %45, %46 : vector<1x128xf32>
    %c1 = arith.constant 1 : index
    %c0_22 = arith.constant 0 : index
    %48 = vector.load %arg4[%c1, %c0_22] : memref<24x128xf32, #tpu.memory_space<vmem>>, vector<1x128xf32>
    %cst_23 = arith.constant 9.99999974E-6 : f32
    %49 = vector.broadcast %cst_23 : f32 to vector<1x128xf32>
    %50 = arith.addf %47, %49 : vector<1x128xf32>
    %51 = math.rsqrt %50 : vector<1x128xf32>
    %52 = arith.mulf %48, %51 : vector<1x128xf32>
    %c10 = arith.constant 10 : index
    %c0_24 = arith.constant 0 : index
    %53 = vector.load %arg4[%c10, %c0_24] : memref<24x128xf32, #tpu.memory_space<vmem>>, vector<1x128xf32>
    %54 = arith.mulf %38, %52 : vector<1x128xf32>
    %55 = arith.subf %53, %54 : vector<1x128xf32>
    %56 = vector.broadcast %52 : vector<1x128xf32> to vector<8x128xf32>
    %57 = arith.mulf %34, %56 : vector<8x128xf32>
    %58 = vector.broadcast %55 : vector<1x128xf32> to vector<8x128xf32>
    %59 = arith.addf %57, %58 : vector<8x128xf32>
    %cst_25 = arith.constant 0.000000e+00 : f32
    %60 = vector.broadcast %cst_25 : f32 to vector<8x128xf32>
    %61 = arith.maximumf %59, %60 : vector<8x128xf32>
    %62 = vector.extract_strided_slice %61 {offsets = [0, 0], sizes = [8, 32], strides = [1, 1]} : vector<8x128xf32> to vector<8x32xf32>
    %c1_26 = arith.constant 1 : index
    %c0_27 = arith.constant 0 : index
    %c0_28 = arith.constant 0 : index
    %63 = vector.load %arg3[%c1_26, %c0_27, %c0_28] : memref<11x32x128xf32, #tpu.memory_space<vmem>>, vector<1x32x128xf32>
    %64 = vector.shape_cast %63 : vector<1x32x128xf32> to vector<32x128xf32>
    %cst_29 = arith.constant dense<0.000000e+00> : vector<8x128xf32>
    %65 = tpu.matmul %62, %64, %cst_29 {dimension_numbers = #tpu.dot_dimension_numbers<[1], [0], [0], [1], [0, 0, 1, 1], [], []>} : vector<8x32xf32>, vector<32x128xf32>, vector<8x128xf32> -> vector<8x128xf32>
    %cst_30 = arith.constant dense<0.000000e+00> : vector<128xf32>
    %66 = vector.multi_reduction <add>, %65, %cst_30 [0] : vector<8x128xf32> to vector<128xf32>
    %67 = vector.shape_cast %66 : vector<128xf32> to vector<1x128xf32>
    %cst_31 = arith.constant 8.000000e+00 : f32
    %68 = vector.broadcast %cst_31 : f32 to vector<1x128xf32>
    %69 = arith.divf %67, %68 : vector<1x128xf32>
    %70 = arith.mulf %65, %65 : vector<8x128xf32>
    %cst_32 = arith.constant dense<0.000000e+00> : vector<128xf32>
    %71 = vector.multi_reduction <add>, %70, %cst_32 [0] : vector<8x128xf32> to vector<128xf32>
    %72 = vector.shape_cast %71 : vector<128xf32> to vector<1x128xf32>
    %cst_33 = arith.constant 8.000000e+00 : f32
    %73 = vector.broadcast %cst_33 : f32 to vector<1x128xf32>
    %74 = arith.divf %72, %73 : vector<1x128xf32>
    %75 = arith.mulf %69, %69 : vector<1x128xf32>
    %76 = arith.subf %74, %75 : vector<1x128xf32>
    %cst_34 = arith.constant 0.000000e+00 : f32
    %77 = vector.broadcast %cst_34 : f32 to vector<1x128xf32>
    %78 = arith.maximumf %76, %77 : vector<1x128xf32>
    %c2 = arith.constant 2 : index
    %c0_35 = arith.constant 0 : index
    %79 = vector.load %arg4[%c2, %c0_35] : memref<24x128xf32, #tpu.memory_space<vmem>>, vector<1x128xf32>
    %cst_36 = arith.constant 9.99999974E-6 : f32
    %80 = vector.broadcast %cst_36 : f32 to vector<1x128xf32>
    %81 = arith.addf %78, %80 : vector<1x128xf32>
    %82 = math.rsqrt %81 : vector<1x128xf32>
    %83 = arith.mulf %79, %82 : vector<1x128xf32>
    %c11 = arith.constant 11 : index
    %c0_37 = arith.constant 0 : index
    %84 = vector.load %arg4[%c11, %c0_37] : memref<24x128xf32, #tpu.memory_space<vmem>>, vector<1x128xf32>
    %85 = arith.mulf %69, %83 : vector<1x128xf32>
    %86 = arith.subf %84, %85 : vector<1x128xf32>
    %87 = vector.broadcast %83 : vector<1x128xf32> to vector<8x128xf32>
    %88 = arith.mulf %65, %87 : vector<8x128xf32>
    %89 = vector.broadcast %86 : vector<1x128xf32> to vector<8x128xf32>
    %90 = arith.addf %88, %89 : vector<8x128xf32>
    %cst_38 = arith.constant 0.000000e+00 : f32
    %91 = vector.broadcast %cst_38 : f32 to vector<8x128xf32>
    %92 = arith.maximumf %90, %91 : vector<8x128xf32>
    %93 = vector.extract_strided_slice %92 {offsets = [0, 0], sizes = [8, 32], strides = [1, 1]} : vector<8x128xf32> to vector<8x32xf32>
    %c2_39 = arith.constant 2 : index
    %c0_40 = arith.constant 0 : index
    %c0_41 = arith.constant 0 : index
    %94 = vector.load %arg3[%c2_39, %c0_40, %c0_41] : memref<11x32x128xf32, #tpu.memory_space<vmem>>, vector<1x32x128xf32>
    %95 = vector.shape_cast %94 : vector<1x32x128xf32> to vector<32x128xf32>
    %cst_42 = arith.constant dense<0.000000e+00> : vector<8x128xf32>
    %96 = tpu.matmul %93, %95, %cst_42 {dimension_numbers = #tpu.dot_dimension_numbers<[1], [0], [0], [1], [0, 0, 1, 1], [], []>} : vector<8x32xf32>, vector<32x128xf32>, vector<8x128xf32> -> vector<8x128xf32>
    %c18 = arith.constant 18 : index
    %c0_43 = arith.constant 0 : index
    %97 = vector.load %arg4[%c18, %c0_43] : memref<24x128xf32, #tpu.memory_space<vmem>>, vector<1x128xf32>
    %98 = vector.broadcast %97 : vector<1x128xf32> to vector<8x128xf32>
    %99 = arith.addf %96, %98 : vector<8x128xf32>
    %c0_44 = arith.constant 0 : index
    %c0_45 = arith.constant 0 : index
    %c0_46 = arith.constant 0 : index
    %100 = vector.load %arg5[%c0_44, %c0_45, %c0_46] : memref<3x8x128xf32, #tpu.memory_space<vmem>>, vector<1x8x128xf32>
    %101 = vector.shape_cast %100 : vector<1x8x128xf32> to vector<8x128xf32>
    %102 = vector.shape_cast %99 : vector<8x128xf32> to vector<1x8x128xf32>
    tpu.vector_store %arg5[%c0_44, %c0_45, %c0_46], %102 {strides = array<i32>} : memref<3x8x128xf32, #tpu.memory_space<vmem>>, vector<1x8x128xf32>,
    %103 = vector.extract_strided_slice %99 {offsets = [0, 0], sizes = [8, 32], strides = [1, 1]} : vector<8x128xf32> to vector<8x32xf32>
    %c3 = arith.constant 3 : index
    %c0_47 = arith.constant 0 : index
    %c0_48 = arith.constant 0 : index
    %104 = vector.load %arg3[%c3, %c0_47, %c0_48] : memref<11x32x128xf32, #tpu.memory_space<vmem>>, vector<1x32x128xf32>
    %105 = vector.shape_cast %104 : vector<1x32x128xf32> to vector<32x128xf32>
    %cst_49 = arith.constant dense<0.000000e+00> : vector<8x128xf32>
    %106 = tpu.matmul %103, %105, %cst_49 {dimension_numbers = #tpu.dot_dimension_numbers<[1], [0], [0], [1], [0, 0, 1, 1], [], []>} : vector<8x32xf32>, vector<32x128xf32>, vector<8x128xf32> -> vector<8x128xf32>
    %107 = vector.extract_strided_slice %2 {offsets = [0, 128], sizes = [8, 128], strides = [1, 1]} : vector<8x384xf32> to vector<8x128xf32>
    %108 = arith.addf %106, %107 : vector<8x128xf32>
    %cst_50 = arith.constant dense<0.000000e+00> : vector<128xf32>
    %109 = vector.multi_reduction <add>, %108, %cst_50 [0] : vector<8x128xf32> to vector<128xf32>
    %110 = vector.shape_cast %109 : vector<128xf32> to vector<1x128xf32>
    %cst_51 = arith.constant 8.000000e+00 : f32
    %111 = vector.broadcast %cst_51 : f32 to vector<1x128xf32>
    %112 = arith.divf %110, %111 : vector<1x128xf32>
    %113 = arith.mulf %108, %108 : vector<8x128xf32>
    %cst_52 = arith.constant dense<0.000000e+00> : vector<128xf32>
    %114 = vector.multi_reduction <add>, %113, %cst_52 [0] : vector<8x128xf32> to vector<128xf32>
    %115 = vector.shape_cast %114 : vector<128xf32> to vector<1x128xf32>
    %cst_53 = arith.constant 8.000000e+00 : f32
    %116 = vector.broadcast %cst_53 : f32 to vector<1x128xf32>
    %117 = arith.divf %115, %116 : vector<1x128xf32>
    %118 = arith.mulf %112, %112 : vector<1x128xf32>
    %119 = arith.subf %117, %118 : vector<1x128xf32>
    %cst_54 = arith.constant 0.000000e+00 : f32
    %120 = vector.broadcast %cst_54 : f32 to vector<1x128xf32>
    %121 = arith.maximumf %119, %120 : vector<1x128xf32>
    %c3_55 = arith.constant 3 : index
    %c0_56 = arith.constant 0 : index
    %122 = vector.load %arg4[%c3_55, %c0_56] : memref<24x128xf32, #tpu.memory_space<vmem>>, vector<1x128xf32>
    %cst_57 = arith.constant 9.99999974E-6 : f32
    %123 = vector.broadcast %cst_57 : f32 to vector<1x128xf32>
    %124 = arith.addf %121, %123 : vector<1x128xf32>
    %125 = math.rsqrt %124 : vector<1x128xf32>
    %126 = arith.mulf %122, %125 : vector<1x128xf32>
    %c12 = arith.constant 12 : index
    %c0_58 = arith.constant 0 : index
    %127 = vector.load %arg4[%c12, %c0_58] : memref<24x128xf32, #tpu.memory_space<vmem>>, vector<1x128xf32>
    %128 = arith.mulf %112, %126 : vector<1x128xf32>
    %129 = arith.subf %127, %128 : vector<1x128xf32>
    %130 = vector.broadcast %126 : vector<1x128xf32> to vector<8x128xf32>
    %131 = arith.mulf %108, %130 : vector<8x128xf32>
    %132 = vector.broadcast %129 : vector<1x128xf32> to vector<8x128xf32>
    %133 = arith.addf %131, %132 : vector<8x128xf32>
    %cst_59 = arith.constant 0.000000e+00 : f32
    %134 = vector.broadcast %cst_59 : f32 to vector<8x128xf32>
    %135 = arith.maximumf %133, %134 : vector<8x128xf32>
    %136 = vector.extract_strided_slice %135 {offsets = [0, 0], sizes = [8, 32], strides = [1, 1]} : vector<8x128xf32> to vector<8x32xf32>
    %c4 = arith.constant 4 : index
    %c0_60 = arith.constant 0 : index
    %c0_61 = arith.constant 0 : index
    %137 = vector.load %arg3[%c4, %c0_60, %c0_61] : memref<11x32x128xf32, #tpu.memory_space<vmem>>, vector<1x32x128xf32>
    %138 = vector.shape_cast %137 : vector<1x32x128xf32> to vector<32x128xf32>
    %cst_62 = arith.constant dense<0.000000e+00> : vector<8x128xf32>
    %139 = tpu.matmul %136, %138, %cst_62 {dimension_numbers = #tpu.dot_dimension_numbers<[1], [0], [0], [1], [0, 0, 1, 1], [], []>} : vector<8x32xf32>, vector<32x128xf32>, vector<8x128xf32> -> vector<8x128xf32>
    %cst_63 = arith.constant dense<0.000000e+00> : vector<128xf32>
    %140 = vector.multi_reduction <add>, %139, %cst_63 [0] : vector<8x128xf32> to vector<128xf32>
    %141 = vector.shape_cast %140 : vector<128xf32> to vector<1x128xf32>
    %cst_64 = arith.constant 8.000000e+00 : f32
    %142 = vector.broadcast %cst_64 : f32 to vector<1x128xf32>
    %143 = arith.divf %141, %142 : vector<1x128xf32>
    %144 = arith.mulf %139, %139 : vector<8x128xf32>
    %cst_65 = arith.constant dense<0.000000e+00> : vector<128xf32>
    %145 = vector.multi_reduction <add>, %144, %cst_65 [0] : vector<8x128xf32> to vector<128xf32>
    %146 = vector.shape_cast %145 : vector<128xf32> to vector<1x128xf32>
    %cst_66 = arith.constant 8.000000e+00 : f32
    %147 = vector.broadcast %cst_66 : f32 to vector<1x128xf32>
    %148 = arith.divf %146, %147 : vector<1x128xf32>
    %149 = arith.mulf %143, %143 : vector<1x128xf32>
    %150 = arith.subf %148, %149 : vector<1x128xf32>
    %cst_67 = arith.constant 0.000000e+00 : f32
    %151 = vector.broadcast %cst_67 : f32 to vector<1x128xf32>
    %152 = arith.maximumf %150, %151 : vector<1x128xf32>
    %c4_68 = arith.constant 4 : index
    %c0_69 = arith.constant 0 : index
    %153 = vector.load %arg4[%c4_68, %c0_69] : memref<24x128xf32, #tpu.memory_space<vmem>>, vector<1x128xf32>
    %cst_70 = arith.constant 9.99999974E-6 : f32
    %154 = vector.broadcast %cst_70 : f32 to vector<1x128xf32>
    %155 = arith.addf %152, %154 : vector<1x128xf32>
    %156 = math.rsqrt %155 : vector<1x128xf32>
    %157 = arith.mulf %153, %156 : vector<1x128xf32>
    %c13 = arith.constant 13 : index
    %c0_71 = arith.constant 0 : index
    %158 = vector.load %arg4[%c13, %c0_71] : memref<24x128xf32, #tpu.memory_space<vmem>>, vector<1x128xf32>
    %159 = arith.mulf %143, %157 : vector<1x128xf32>
    %160 = arith.subf %158, %159 : vector<1x128xf32>
    %161 = vector.broadcast %157 : vector<1x128xf32> to vector<8x128xf32>
    %162 = arith.mulf %139, %161 : vector<8x128xf32>
    %163 = vector.broadcast %160 : vector<1x128xf32> to vector<8x128xf32>
    %164 = arith.addf %162, %163 : vector<8x128xf32>
    %cst_72 = arith.constant 0.000000e+00 : f32
    %165 = vector.broadcast %cst_72 : f32 to vector<8x128xf32>
    %166 = arith.maximumf %164, %165 : vector<8x128xf32>
    %167 = vector.extract_strided_slice %166 {offsets = [0, 0], sizes = [8, 32], strides = [1, 1]} : vector<8x128xf32> to vector<8x32xf32>
    %c5 = arith.constant 5 : index
    %c0_73 = arith.constant 0 : index
    %c0_74 = arith.constant 0 : index
    %168 = vector.load %arg3[%c5, %c0_73, %c0_74] : memref<11x32x128xf32, #tpu.memory_space<vmem>>, vector<1x32x128xf32>
    %169 = vector.shape_cast %168 : vector<1x32x128xf32> to vector<32x128xf32>
    %cst_75 = arith.constant dense<0.000000e+00> : vector<8x128xf32>
    %170 = tpu.matmul %167, %169, %cst_75 {dimension_numbers = #tpu.dot_dimension_numbers<[1], [0], [0], [1], [0, 0, 1, 1], [], []>} : vector<8x32xf32>, vector<32x128xf32>, vector<8x128xf32> -> vector<8x128xf32>
    %cst_76 = arith.constant dense<0.000000e+00> : vector<128xf32>
    %171 = vector.multi_reduction <add>, %170, %cst_76 [0] : vector<8x128xf32> to vector<128xf32>
    %172 = vector.shape_cast %171 : vector<128xf32> to vector<1x128xf32>
    %cst_77 = arith.constant 8.000000e+00 : f32
    %173 = vector.broadcast %cst_77 : f32 to vector<1x128xf32>
    %174 = arith.divf %172, %173 : vector<1x128xf32>
    %175 = arith.mulf %170, %170 : vector<8x128xf32>
    %cst_78 = arith.constant dense<0.000000e+00> : vector<128xf32>
    %176 = vector.multi_reduction <add>, %175, %cst_78 [0] : vector<8x128xf32> to vector<128xf32>
    %177 = vector.shape_cast %176 : vector<128xf32> to vector<1x128xf32>
    %cst_79 = arith.constant 8.000000e+00 : f32
    %178 = vector.broadcast %cst_79 : f32 to vector<1x128xf32>
    %179 = arith.divf %177, %178 : vector<1x128xf32>
    %180 = arith.mulf %174, %174 : vector<1x128xf32>
    %181 = arith.subf %179, %180 : vector<1x128xf32>
    %cst_80 = arith.constant 0.000000e+00 : f32
    %182 = vector.broadcast %cst_80 : f32 to vector<1x128xf32>
    %183 = arith.maximumf %181, %182 : vector<1x128xf32>
    %c5_81 = arith.constant 5 : index
    %c0_82 = arith.constant 0 : index
    %184 = vector.load %arg4[%c5_81, %c0_82] : memref<24x128xf32, #tpu.memory_space<vmem>>, vector<1x128xf32>
    %cst_83 = arith.constant 9.99999974E-6 : f32
    %185 = vector.broadcast %cst_83 : f32 to vector<1x128xf32>
    %186 = arith.addf %183, %185 : vector<1x128xf32>
    %187 = math.rsqrt %186 : vector<1x128xf32>
    %188 = arith.mulf %184, %187 : vector<1x128xf32>
    %c14 = arith.constant 14 : index
    %c0_84 = arith.constant 0 : index
    %189 = vector.load %arg4[%c14, %c0_84] : memref<24x128xf32, #tpu.memory_space<vmem>>, vector<1x128xf32>
    %190 = arith.mulf %174, %188 : vector<1x128xf32>
    %191 = arith.subf %189, %190 : vector<1x128xf32>
    %192 = vector.broadcast %188 : vector<1x128xf32> to vector<8x128xf32>
    %193 = arith.mulf %170, %192 : vector<8x128xf32>
    %194 = vector.broadcast %191 : vector<1x128xf32> to vector<8x128xf32>
    %195 = arith.addf %193, %194 : vector<8x128xf32>
    %cst_85 = arith.constant 0.000000e+00 : f32
    %196 = vector.broadcast %cst_85 : f32 to vector<8x128xf32>
    %197 = arith.maximumf %195, %196 : vector<8x128xf32>
    %198 = vector.extract_strided_slice %197 {offsets = [0, 0], sizes = [8, 32], strides = [1, 1]} : vector<8x128xf32> to vector<8x32xf32>
    %c6 = arith.constant 6 : index
    %c0_86 = arith.constant 0 : index
    %c0_87 = arith.constant 0 : index
    %199 = vector.load %arg3[%c6, %c0_86, %c0_87] : memref<11x32x128xf32, #tpu.memory_space<vmem>>, vector<1x32x128xf32>
    %200 = vector.shape_cast %199 : vector<1x32x128xf32> to vector<32x128xf32>
    %cst_88 = arith.constant dense<0.000000e+00> : vector<8x128xf32>
    %201 = tpu.matmul %198, %200, %cst_88 {dimension_numbers = #tpu.dot_dimension_numbers<[1], [0], [0], [1], [0, 0, 1, 1], [], []>} : vector<8x32xf32>, vector<32x128xf32>, vector<8x128xf32> -> vector<8x128xf32>
    %c19 = arith.constant 19 : index
    %c0_89 = arith.constant 0 : index
    %202 = vector.load %arg4[%c19, %c0_89] : memref<24x128xf32, #tpu.memory_space<vmem>>, vector<1x128xf32>
    %203 = vector.broadcast %202 : vector<1x128xf32> to vector<8x128xf32>
    %204 = arith.addf %201, %203 : vector<8x128xf32>
    %c1_90 = arith.constant 1 : index
    %c0_91 = arith.constant 0 : index
    %c0_92 = arith.constant 0 : index
    %205 = vector.load %arg5[%c1_90, %c0_91, %c0_92] : memref<3x8x128xf32, #tpu.memory_space<vmem>>, vector<1x8x128xf32>
    %206 = vector.shape_cast %205 : vector<1x8x128xf32> to vector<8x128xf32>
    %207 = vector.shape_cast %204 : vector<8x128xf32> to vector<1x8x128xf32>
    tpu.vector_store %arg5[%c1_90, %c0_91, %c0_92], %207 {strides = array<i32>} : memref<3x8x128xf32, #tpu.memory_space<vmem>>, vector<1x8x128xf32>,
    %208 = vector.extract_strided_slice %204 {offsets = [0, 0], sizes = [8, 32], strides = [1, 1]} : vector<8x128xf32> to vector<8x32xf32>
    %c7 = arith.constant 7 : index
    %c0_93 = arith.constant 0 : index
    %c0_94 = arith.constant 0 : index
    %209 = vector.load %arg3[%c7, %c0_93, %c0_94] : memref<11x32x128xf32, #tpu.memory_space<vmem>>, vector<1x32x128xf32>
    %210 = vector.shape_cast %209 : vector<1x32x128xf32> to vector<32x128xf32>
    %cst_95 = arith.constant dense<0.000000e+00> : vector<8x128xf32>
    %211 = tpu.matmul %208, %210, %cst_95 {dimension_numbers = #tpu.dot_dimension_numbers<[1], [0], [0], [1], [0, 0, 1, 1], [], []>} : vector<8x32xf32>, vector<32x128xf32>, vector<8x128xf32> -> vector<8x128xf32>
    %212 = vector.extract_strided_slice %2 {offsets = [0, 256], sizes = [8, 128], strides = [1, 1]} : vector<8x384xf32> to vector<8x128xf32>
    %213 = arith.addf %211, %212 : vector<8x128xf32>
    %cst_96 = arith.constant dense<0.000000e+00> : vector<128xf32>
    %214 = vector.multi_reduction <add>, %213, %cst_96 [0] : vector<8x128xf32> to vector<128xf32>
    %215 = vector.shape_cast %214 : vector<128xf32> to vector<1x128xf32>
    %cst_97 = arith.constant 8.000000e+00 : f32
    %216 = vector.broadcast %cst_97 : f32 to vector<1x128xf32>
    %217 = arith.divf %215, %216 : vector<1x128xf32>
    %218 = arith.mulf %213, %213 : vector<8x128xf32>
    %cst_98 = arith.constant dense<0.000000e+00> : vector<128xf32>
    %219 = vector.multi_reduction <add>, %218, %cst_98 [0] : vector<8x128xf32> to vector<128xf32>
    %220 = vector.shape_cast %219 : vector<128xf32> to vector<1x128xf32>
    %cst_99 = arith.constant 8.000000e+00 : f32
    %221 = vector.broadcast %cst_99 : f32 to vector<1x128xf32>
    %222 = arith.divf %220, %221 : vector<1x128xf32>
    %223 = arith.mulf %217, %217 : vector<1x128xf32>
    %224 = arith.subf %222, %223 : vector<1x128xf32>
    %cst_100 = arith.constant 0.000000e+00 : f32
    %225 = vector.broadcast %cst_100 : f32 to vector<1x128xf32>
    %226 = arith.maximumf %224, %225 : vector<1x128xf32>
    %c6_101 = arith.constant 6 : index
    %c0_102 = arith.constant 0 : index
    %227 = vector.load %arg4[%c6_101, %c0_102] : memref<24x128xf32, #tpu.memory_space<vmem>>, vector<1x128xf32>
    %cst_103 = arith.constant 9.99999974E-6 : f32
    %228 = vector.broadcast %cst_103 : f32 to vector<1x128xf32>
    %229 = arith.addf %226, %228 : vector<1x128xf32>
    %230 = math.rsqrt %229 : vector<1x128xf32>
    %231 = arith.mulf %227, %230 : vector<1x128xf32>
    %c15 = arith.constant 15 : index
    %c0_104 = arith.constant 0 : index
    %232 = vector.load %arg4[%c15, %c0_104] : memref<24x128xf32, #tpu.memory_space<vmem>>, vector<1x128xf32>
    %233 = arith.mulf %217, %231 : vector<1x128xf32>
    %234 = arith.subf %232, %233 : vector<1x128xf32>
    %235 = vector.broadcast %231 : vector<1x128xf32> to vector<8x128xf32>
    %236 = arith.mulf %213, %235 : vector<8x128xf32>
    %237 = vector.broadcast %234 : vector<1x128xf32> to vector<8x128xf32>
    %238 = arith.addf %236, %237 : vector<8x128xf32>
    %cst_105 = arith.constant 0.000000e+00 : f32
    %239 = vector.broadcast %cst_105 : f32 to vector<8x128xf32>
    %240 = arith.maximumf %238, %239 : vector<8x128xf32>
    %241 = vector.extract_strided_slice %240 {offsets = [0, 0], sizes = [8, 32], strides = [1, 1]} : vector<8x128xf32> to vector<8x32xf32>
    %c8 = arith.constant 8 : index
    %c0_106 = arith.constant 0 : index
    %c0_107 = arith.constant 0 : index
    %242 = vector.load %arg3[%c8, %c0_106, %c0_107] : memref<11x32x128xf32, #tpu.memory_space<vmem>>, vector<1x32x128xf32>
    %243 = vector.shape_cast %242 : vector<1x32x128xf32> to vector<32x128xf32>
    %cst_108 = arith.constant dense<0.000000e+00> : vector<8x128xf32>
    %244 = tpu.matmul %241, %243, %cst_108 {dimension_numbers = #tpu.dot_dimension_numbers<[1], [0], [0], [1], [0, 0, 1, 1], [], []>} : vector<8x32xf32>, vector<32x128xf32>, vector<8x128xf32> -> vector<8x128xf32>
    %cst_109 = arith.constant dense<0.000000e+00> : vector<128xf32>
    %245 = vector.multi_reduction <add>, %244, %cst_109 [0] : vector<8x128xf32> to vector<128xf32>
    %246 = vector.shape_cast %245 : vector<128xf32> to vector<1x128xf32>
    %cst_110 = arith.constant 8.000000e+00 : f32
    %247 = vector.broadcast %cst_110 : f32 to vector<1x128xf32>
    %248 = arith.divf %246, %247 : vector<1x128xf32>
    %249 = arith.mulf %244, %244 : vector<8x128xf32>
    %cst_111 = arith.constant dense<0.000000e+00> : vector<128xf32>
    %250 = vector.multi_reduction <add>, %249, %cst_111 [0] : vector<8x128xf32> to vector<128xf32>
    %251 = vector.shape_cast %250 : vector<128xf32> to vector<1x128xf32>
    %cst_112 = arith.constant 8.000000e+00 : f32
    %252 = vector.broadcast %cst_112 : f32 to vector<1x128xf32>
    %253 = arith.divf %251, %252 : vector<1x128xf32>
    %254 = arith.mulf %248, %248 : vector<1x128xf32>
    %255 = arith.subf %253, %254 : vector<1x128xf32>
    %cst_113 = arith.constant 0.000000e+00 : f32
    %256 = vector.broadcast %cst_113 : f32 to vector<1x128xf32>
    %257 = arith.maximumf %255, %256 : vector<1x128xf32>
    %c7_114 = arith.constant 7 : index
    %c0_115 = arith.constant 0 : index
    %258 = vector.load %arg4[%c7_114, %c0_115] : memref<24x128xf32, #tpu.memory_space<vmem>>, vector<1x128xf32>
    %cst_116 = arith.constant 9.99999974E-6 : f32
    %259 = vector.broadcast %cst_116 : f32 to vector<1x128xf32>
    %260 = arith.addf %257, %259 : vector<1x128xf32>
    %261 = math.rsqrt %260 : vector<1x128xf32>
    %262 = arith.mulf %258, %261 : vector<1x128xf32>
    %c16 = arith.constant 16 : index
    %c0_117 = arith.constant 0 : index
    %263 = vector.load %arg4[%c16, %c0_117] : memref<24x128xf32, #tpu.memory_space<vmem>>, vector<1x128xf32>
    %264 = arith.mulf %248, %262 : vector<1x128xf32>
    %265 = arith.subf %263, %264 : vector<1x128xf32>
    %266 = vector.broadcast %262 : vector<1x128xf32> to vector<8x128xf32>
    %267 = arith.mulf %244, %266 : vector<8x128xf32>
    %268 = vector.broadcast %265 : vector<1x128xf32> to vector<8x128xf32>
    %269 = arith.addf %267, %268 : vector<8x128xf32>
    %cst_118 = arith.constant 0.000000e+00 : f32
    %270 = vector.broadcast %cst_118 : f32 to vector<8x128xf32>
    %271 = arith.maximumf %269, %270 : vector<8x128xf32>
    %272 = vector.extract_strided_slice %271 {offsets = [0, 0], sizes = [8, 32], strides = [1, 1]} : vector<8x128xf32> to vector<8x32xf32>
    %c9_119 = arith.constant 9 : index
    %c0_120 = arith.constant 0 : index
    %c0_121 = arith.constant 0 : index
    %273 = vector.load %arg3[%c9_119, %c0_120, %c0_121] : memref<11x32x128xf32, #tpu.memory_space<vmem>>, vector<1x32x128xf32>
    %274 = vector.shape_cast %273 : vector<1x32x128xf32> to vector<32x128xf32>
    %cst_122 = arith.constant dense<0.000000e+00> : vector<8x128xf32>
    %275 = tpu.matmul %272, %274, %cst_122 {dimension_numbers = #tpu.dot_dimension_numbers<[1], [0], [0], [1], [0, 0, 1, 1], [], []>} : vector<8x32xf32>, vector<32x128xf32>, vector<8x128xf32> -> vector<8x128xf32>
    %cst_123 = arith.constant dense<0.000000e+00> : vector<128xf32>
    %276 = vector.multi_reduction <add>, %275, %cst_123 [0] : vector<8x128xf32> to vector<128xf32>
    %277 = vector.shape_cast %276 : vector<128xf32> to vector<1x128xf32>
    %cst_124 = arith.constant 8.000000e+00 : f32
    %278 = vector.broadcast %cst_124 : f32 to vector<1x128xf32>
    %279 = arith.divf %277, %278 : vector<1x128xf32>
    %280 = arith.mulf %275, %275 : vector<8x128xf32>
    %cst_125 = arith.constant dense<0.000000e+00> : vector<128xf32>
    %281 = vector.multi_reduction <add>, %280, %cst_125 [0] : vector<8x128xf32> to vector<128xf32>
    %282 = vector.shape_cast %281 : vector<128xf32> to vector<1x128xf32>
    %cst_126 = arith.constant 8.000000e+00 : f32
    %283 = vector.broadcast %cst_126 : f32 to vector<1x128xf32>
    %284 = arith.divf %282, %283 : vector<1x128xf32>
    %285 = arith.mulf %279, %279 : vector<1x128xf32>
    %286 = arith.subf %284, %285 : vector<1x128xf32>
    %cst_127 = arith.constant 0.000000e+00 : f32
    %287 = vector.broadcast %cst_127 : f32 to vector<1x128xf32>
    %288 = arith.maximumf %286, %287 : vector<1x128xf32>
    %c8_128 = arith.constant 8 : index
    %c0_129 = arith.constant 0 : index
    %289 = vector.load %arg4[%c8_128, %c0_129] : memref<24x128xf32, #tpu.memory_space<vmem>>, vector<1x128xf32>
    %cst_130 = arith.constant 9.99999974E-6 : f32
    %290 = vector.broadcast %cst_130 : f32 to vector<1x128xf32>
    %291 = arith.addf %288, %290 : vector<1x128xf32>
    %292 = math.rsqrt %291 : vector<1x128xf32>
    %293 = arith.mulf %289, %292 : vector<1x128xf32>
    %c17 = arith.constant 17 : index
    %c0_131 = arith.constant 0 : index
    %294 = vector.load %arg4[%c17, %c0_131] : memref<24x128xf32, #tpu.memory_space<vmem>>, vector<1x128xf32>
    %295 = arith.mulf %279, %293 : vector<1x128xf32>
    %296 = arith.subf %294, %295 : vector<1x128xf32>
    %297 = vector.broadcast %293 : vector<1x128xf32> to vector<8x128xf32>
    %298 = arith.mulf %275, %297 : vector<8x128xf32>
    %299 = vector.broadcast %296 : vector<1x128xf32> to vector<8x128xf32>
    %300 = arith.addf %298, %299 : vector<8x128xf32>
    %cst_132 = arith.constant 0.000000e+00 : f32
    %301 = vector.broadcast %cst_132 : f32 to vector<8x128xf32>
    %302 = arith.maximumf %300, %301 : vector<8x128xf32>
    %303 = vector.extract_strided_slice %302 {offsets = [0, 0], sizes = [8, 32], strides = [1, 1]} : vector<8x128xf32> to vector<8x32xf32>
    %c10_133 = arith.constant 10 : index
    %c0_134 = arith.constant 0 : index
    %c0_135 = arith.constant 0 : index
    %304 = vector.load %arg3[%c10_133, %c0_134, %c0_135] : memref<11x32x128xf32, #tpu.memory_space<vmem>>, vector<1x32x128xf32>
    %305 = vector.shape_cast %304 : vector<1x32x128xf32> to vector<32x128xf32>
    %cst_136 = arith.constant dense<0.000000e+00> : vector<8x128xf32>
    %306 = tpu.matmul %303, %305, %cst_136 {dimension_numbers = #tpu.dot_dimension_numbers<[1], [0], [0], [1], [0, 0, 1, 1], [], []>} : vector<8x32xf32>, vector<32x128xf32>, vector<8x128xf32> -> vector<8x128xf32>
    %c20 = arith.constant 20 : index
    %c0_137 = arith.constant 0 : index
    %307 = vector.load %arg4[%c20, %c0_137] : memref<24x128xf32, #tpu.memory_space<vmem>>, vector<1x128xf32>
    %308 = vector.broadcast %307 : vector<1x128xf32> to vector<8x128xf32>
    %309 = arith.addf %306, %308 : vector<8x128xf32>
    %c2_138 = arith.constant 2 : index
    %c0_139 = arith.constant 0 : index
    %c0_140 = arith.constant 0 : index
    %310 = vector.load %arg5[%c2_138, %c0_139, %c0_140] : memref<3x8x128xf32, #tpu.memory_space<vmem>>, vector<1x8x128xf32>
    %311 = vector.shape_cast %310 : vector<1x8x128xf32> to vector<8x128xf32>
    %312 = vector.shape_cast %309 : vector<8x128xf32> to vector<1x8x128xf32>
    tpu.vector_store %arg5[%c2_138, %c0_139, %c0_140], %312 {strides = array<i32>} : memref<3x8x128xf32, #tpu.memory_space<vmem>>, vector<1x8x128xf32>,
    return
  }
  func.func @transform_0(%arg0: i32) -> (i32, i32) {
    %c0_i32 = arith.constant 0 : i32
    %c0_i32_0 = arith.constant 0 : i32
    %c0_i32_1 = arith.constant 0 : i32
    return %c0_i32, %c0_i32_0 : i32, i32
  }
  func.func @transform_1(%arg0: i32) -> (i32, i32) {
    %c0_i32 = arith.constant 0 : i32
    %c0_i32_0 = arith.constant 0 : i32
    %c0_i32_1 = arith.constant 0 : i32
    return %c0_i32, %c0_i32_0 : i32, i32
  }
  func.func @transform_2(%arg0: i32) -> (i32, i32, i32) {
    %c0_i32 = arith.constant 0 : i32
    %c0_i32_0 = arith.constant 0 : i32
    %c0_i32_1 = arith.constant 0 : i32
    %c0_i32_2 = arith.constant 0 : i32
    return %c0_i32, %c0_i32_0, %c0_i32_1 : i32, i32, i32
  }
  func.func @transform_3(%arg0: i32) -> (i32, i32) {
    %c0_i32 = arith.constant 0 : i32
    %c0_i32_0 = arith.constant 0 : i32
    %c0_i32_1 = arith.constant 0 : i32
    return %c0_i32, %c0_i32_0 : i32, i32
  }
  func.func @transform_4(%arg0: i32) -> (i32, i32, i32) {
    %c0_i32 = arith.constant 0 : i32
    %c0_i32_0 = arith.constant 0 : i32
    %c0_i32_1 = arith.constant 0 : i32
    %c0_i32_2 = arith.constant 0 : i32
    return %c0_i32, %c0_i32_0, %c0_i32_1 : i32, i32, i32
  }
}

</mosaic_0001>

<llo_original>
// kernel: net_forward.1
$region0: #{net_forward.1}
  #allocation0 [shape = 'u32[]', space=smem, size = 0x4, offset = 0x4, fixed_abs, tag = 'smem constant byte address 0x4 - core index']
  #allocation1 [shape = 'u32[144,128]{1,0:T(1,128)}', space=vmem, size = 0x12000, scoped, tag = 'internal scratch']
  %s0 = inlined_call_operand.vmem [shape: f32[8,16], index: 0, kind: input, shape index: {}]
  %s1 = inlined_call_operand.hbm [shape: f32[16,384], index: 1, kind: input, shape index: {}]
  %s2 = inlined_call_operand.hbm [shape: f32[11,32,128], index: 2, kind: input, shape index: {}]
  %s3 = inlined_call_operand.hbm [shape: f32[24,128], index: 3, kind: input, shape index: {}]
  %s4 = inlined_call_operand.vmem [shape: f32[3,8,128], index: 4, kind: output, shape index: {}]
  %s5 = sld [smem:[#allocation0]]
  $region38: #{net_forward.1} parent=0
    _
  %s7 = ssub.s32 1, %s5
  %s8 = scalar_select 0, %s7, %s5
  $region1: #{net_forward.1} parent=0
    #allocation2 [shape = 'u8[24576]{0}', space=vmem, size = 0x6000, scoped, tag = 'input window, operand 1, single buffered']
    #allocation3 [shape = 's32[1]{0}', space=sflag, size = 0x4, scoped, tag = 'scoped memory for net_forward.1']
    #allocation4 [shape = 'u8[180224]{0}', space=vmem, size = 0x2c000, scoped, tag = 'input window, operand 2, single buffered']
    #allocation5 [shape = 's32[1]{0}', space=sflag, size = 0x4, scoped, tag = 'scoped memory for net_forward.1']
    #allocation6 [shape = 'u8[12288]{0}', space=vmem, size = 0x3000, scoped, tag = 'input window, operand 3, single buffered']
    %9 = vsyncpa [#allocation3], 0
    %10 = vsyncpa [#allocation5], 0
    // Predicated region
    $region2: #{net_forward.1} parent=1 // pred_check
      _
    $region3: #{net_forward.1} parent=1 // pred_check_branch
      %12 = sbr.rel (0) target = $region5
    $region4: #{net_forward.1} parent=1 // pred_region
      _
    $region5: #{net_forward.1} parent=1 // pred_fallthru
      _
    // Predicated region
    $region6: #{net_forward.1} parent=1 // pred_check
      _
    $region7: #{net_forward.1} parent=1 // pred_check_branch
      %14 = sbr.rel (0) target = $region9
    $region8: #{net_forward.1} parent=1 // pred_region
      %s16 = ssub.s32 768, 768
      %17 = vsyncadd [#allocation3], %s16
      %s18 = sshll.u32 [#allocation2], 4
      %s19 = int_to_ptr.vmem [resolvable:$true] %s18
      %24 = dma.hbm_to_vmem [thread:$0]  %s1, 768, %s19, [#allocation3], 384, 384, 24
    $region9: #{net_forward.1} parent=1 // pred_fallthru
      _
    // Predicated region
    $region10: #{net_forward.1} parent=1 // pred_check
      _
    $region11: #{net_forward.1} parent=1 // pred_check_branch
      %26 = sbr.rel (0) target = $region13
    $region12: #{net_forward.1} parent=1 // pred_region
      %s28 = ssub.s32 5632, 5632
      %29 = vsyncadd [#allocation5], %s28
      %s30 = sshll.u32 [#allocation4], 4
      %s31 = int_to_ptr.vmem [resolvable:$true] %s30
      %36 = dma.hbm_to_vmem [thread:$0]  %s2, 5632, %s31, [#allocation5], 128, 128, 8
    $region13: #{net_forward.1} parent=1 // pred_fallthru
      _
    // Predicated region
    $region14: #{net_forward.1} parent=1 // pred_check
      _
    $region15: #{net_forward.1} parent=1 // pred_check_branch
      %38 = sbr.rel (0) target = $region17
    $region16: #{net_forward.1} parent=1 // pred_region
      %s40 = ssub.s32 384, 384
      %41 = vsyncadd [#allocation5], %s40
      %s42 = sshll.u32 [#allocation6], 4
      %s43 = int_to_ptr.vmem [resolvable:$true] %s42
      %48 = dma.hbm_to_vmem [thread:$0]  %s3, 384, %s43, [#allocation5], 128, 128, 8
    $region17: #{net_forward.1} parent=1 // pred_fallthru
      _
    // Predicated region
    $region18: #{net_forward.1} parent=1 // pred_check
      _
    $region19: #{net_forward.1} parent=1 // pred_check_branch
      %50 = sbr.rel (0) target = $region21
    $region20: #{net_forward.1} parent=1 // pred_region
      %51 = dma.done [#allocation3], 768
    $region21: #{net_forward.1} parent=1 // pred_fallthru
      _
    // Predicated region
    $region22: #{net_forward.1} parent=1 // pred_check
      _
    $region23: #{net_forward.1} parent=1 // pred_check_branch
      %53 = sbr.rel (0) target = $region25
    $region24: #{net_forward.1} parent=1 // pred_region
      %54 = dma.done [#allocation5], 5632
    $region25: #{net_forward.1} parent=1 // pred_fallthru
      _
    // Predicated region
    $region26: #{net_forward.1} parent=1 // pred_check
      _
    $region27: #{net_forward.1} parent=1 // pred_check_branch
      %56 = sbr.rel (0) target = $region29
    $region28: #{net_forward.1} parent=1 // pred_region
      %57 = dma.done [#allocation5], 384
    $region29: #{net_forward.1} parent=1 // pred_fallthru
      _
    %v58 = vld [vmem:[%s0] sm:$0xff]
    %v59 = vld [vmem:[#allocation2] sm:$0xff]
    %v60 = vld [vmem:[#allocation2 + $0x8] sm:$0xff]
    %v61 = vld [vmem:[#allocation2 + $0x10] sm:$0xff]
    %v62 = vld [vmem:[#allocation2 + $0x18] sm:$0xff]
    %v63 = vld [vmem:[#allocation2 + $0x20] sm:$0xff]
    %v64 = vld [vmem:[#allocation2 + $0x28] sm:$0xff]
    %vm65 = vcmask 130048
    %v67 = vsel %vm65, %v58, 0
    %69 = vmatprep.subr.mxu0 %v60
    %70 = vmatpush1.msra.mxu0 %v59
    %71 = vmatprep.subr.mxu0 %v63
    %72 = vmatpush1.msra.mxu0 %v62
    %73 = vmatprep.subr.mxu0 0.0
    %74 = vmatpush1.msra.mxu0 0.0
    %75 = vmatprep.subr.mxu0 0.0
    %76 = vmatpush1.msra.mxu0 0.0
    %77 = vmatprep.subr.mxu0 0.0
    %78 = vmatpush1.msra.mxu0 0.0
    %79 = vmatprep.subr.mxu0 0.0
    %80 = vmatpush1.msra.mxu0 0.0
    %81 = vmatprep.subr.mxu0 0.0
    %82 = vmatpush1.msra.mxu0 0.0
    %83 = vmatprep.subr.mxu0 0.0
    %84 = vmatpush1.msra.mxu0 0.0
    %85 = vmatprep.subr.mxu0 0.0
    %86 = vmatpush1.msra.mxu0 0.0
    %87 = vmatprep.subr.mxu0 0.0
    %88 = vmatpush1.msra.mxu0 0.0
    %89 = vmatprep.subr.mxu0 0.0
    %90 = vmatpush1.msra.mxu0 0.0
    %91 = vmatprep.subr.mxu0 0.0
    %92 = vmatpush1.msra.mxu0 0.0
    %93 = vmatprep.subr.mxu0 0.0
    %94 = vmatpush1.msra.mxu0 0.0
    %95 = vmatprep.subr.mxu0 0.0
    %96 = vmatpush1.msra.mxu0 0.0
    %97 = vmatprep.subr.mxu0 0.0
    %98 = vmatpush1.msra.mxu0 0.0
    %99 = vmatprep.subr.mxu0 0.0
    %100 = vmatpush1.msra.mxu0 0.0
    %101 = vmatprep.subr.mxu0 0.0
    %102 = vmatpush1.msra.mxu0 0.0
    %103 = vmatprep.subr.mxu0 0.0
    %104 = vmatpush1.msra.mxu0 0.0
    %105 = vmatprep.subr.mxu0 0.0
    %106 = vmatpush1.msra.mxu0 0.0
    %107 = vmatprep.subr.mxu0 0.0
    %108 = vmatpush1.msra.mxu0 0.0
    %109 = vmatprep.subr.mxu0 0.0
    %110 = vmatpush1.msra.mxu0 0.0
    %111 = vmatprep.subr.mxu0 0.0
    %112 = vmatpush1.msra.mxu0 0.0
    %113 = vmatprep.subr.mxu0 0.0
    %114 = vmatpush1.msra.mxu0 0.0
    %115 = vmatprep.subr.mxu0 0.0
    %116 = vmatpush1.msra.mxu0 0.0
    %117 = vmatprep.subr.mxu0 0.0
    %118 = vmatpush1.msra.mxu0 0.0
    %119 = vmatprep.subr.mxu0 0.0
    %120 = vmatpush1.msra.mxu0 0.0
    %121 = vmatprep.subr.mxu0 0.0
    %122 = vmatpush1.msra.mxu0 0.0
    %123 = vmatprep.subr.mxu0 0.0
    %124 = vmatpush1.msra.mxu0 0.0
    %125 = vmatprep.subr.mxu0 0.0
    %126 = vmatpush1.msra.mxu0 0.0
    %127 = vmatprep.subr.mxu0 0.0
    %128 = vmatpush1.msra.mxu0 0.0
    %129 = vmatprep.subr.mxu0 0.0
    %130 = vmatpush1.msra.mxu0 0.0
    %131 = vmatprep.subr.mxu0 0.0
    %132 = vmatpush1.msra.mxu0 0.0
    %133 = vmatprep.mubr.f32.mxu0 0.0
    %134 = vmatmul.mubr.f32.gmra.mrb[0].mxu0 %v67
    %v135 = vpop.f32.mrb[0].mxu0
    %v136 = vadd.f32 0.0, %v135
    %v137 = vpop.f32.mrb[0].mxu0
    %v138 = vadd.f32 0.0, %v137
    %139 = vdwg.mxu0
    %140 = vmatprep.subr.mxu0 0.0
    %141 = vmatpush1.msra.mxu0 %v61
    %142 = vmatprep.subr.mxu0 0.0
    %143 = vmatpush1.msra.mxu0 %v64
    %144 = vmatprep.subr.mxu0 0.0
    %145 = vmatpush1.msra.mxu0 0.0
    %146 = vmatprep.subr.mxu0 0.0
    %147 = vmatpush1.msra.mxu0 0.0
    %148 = vmatprep.subr.mxu0 0.0
    %149 = vmatpush1.msra.mxu0 0.0
    %150 = vmatprep.subr.mxu0 0.0
    %151 = vmatpush1.msra.mxu0 0.0
    %152 = vmatprep.subr.mxu0 0.0
    %153 = vmatpush1.msra.mxu0 0.0
    %154 = vmatprep.subr.mxu0 0.0
    %155 = vmatpush1.msra.mxu0 0.0
    %156 = vmatprep.subr.mxu0 0.0
    %157 = vmatpush1.msra.mxu0 0.0
    %158 = vmatprep.subr.mxu0 0.0
    %159 = vmatpush1.msra.mxu0 0.0
    %160 = vmatprep.subr.mxu0 0.0
    %161 = vmatpush1.msra.mxu0 0.0
    %162 = vmatprep.subr.mxu0 0.0
    %163 = vmatpush1.msra.mxu0 0.0
    %164 = vmatprep.subr.mxu0 0.0
    %165 = vmatpush1.msra.mxu0 0.0
    %166 = vmatprep.subr.mxu0 0.0
    %167 = vmatpush1.msra.mxu0 0.0
    %168 = vmatprep.subr.mxu0 0.0
    %169 = vmatpush1.msra.mxu0 0.0
    %170 = vmatprep.subr.mxu0 0.0
    %171 = vmatpush1.msra.mxu0 0.0
    %172 = vmatprep.subr.mxu0 0.0
    %173 = vmatpush1.msra.mxu0 0.0
    %174 = vmatprep.subr.mxu0 0.0
    %175 = vmatpush1.msra.mxu0 0.0
    %176 = vmatprep.subr.mxu0 0.0
    %177 = vmatpush1.msra.mxu0 0.0
    %178 = vmatprep.subr.mxu0 0.0
    %179 = vmatpush1.msra.mxu0 0.0
    %180 = vmatprep.subr.mxu0 0.0
    %181 = vmatpush1.msra.mxu0 0.0
    %182 = vmatprep.subr.mxu0 0.0
    %183 = vmatpush1.msra.mxu0 0.0
    %184 = vmatprep.subr.mxu0 0.0
    %185 = vmatpush1.msra.mxu0 0.0
    %186 = vmatprep.subr.mxu0 0.0
    %187 = vmatpush1.msra.mxu0 0.0
    %188 = vmatprep.subr.mxu0 0.0
    %189 = vmatpush1.msra.mxu0 0.0
    %190 = vmatprep.subr.mxu0 0.0
    %191 = vmatpush1.msra.mxu0 0.0
    %192 = vmatprep.subr.mxu0 0.0
    %193 = vmatpush1.msra.mxu0 0.0
    %194 = vmatprep.subr.mxu0 0.0
    %195 = vmatpush1.msra.mxu0 0.0
    %196 = vmatprep.subr.mxu0 0.0
    %197 = vmatpush1.msra.mxu0 0.0
    %198 = vmatprep.subr.mxu0 0.0
    %199 = vmatpush1.msra.mxu0 0.0
    %200 = vmatprep.subr.mxu0 0.0
    %201 = vmatpush1.msra.mxu0 0.0
    %202 = vmatprep.subr.mxu0 0.0
    %203 = vmatpush1.msra.mxu0 0.0
    %204 = vmatprep.mubr.f32.mxu0 0.0
    %205 = vmatmul.mubr.f32.gmra.mrb[0].mxu0 %v67
    %v206 = vpop.f32.mrb[0].mxu0
    %v207 = vadd.f32 0.0, %v206
    %v208 = vpop.f32.mrb[0].mxu0
    %209 = vdwg.mxu0
    %v210 = vrot.slane %v136, 4
    %v211 = vadd.f32 %v136, %v210
    %v212 = vrot.slane %v211, 2
    %v213 = vadd.f32 %v211, %v212
    %v214 = vrot.slane %v213, 1
    %v215 = vadd.f32 %v213, %v214
    %v216 = vrcp.pop 8.0
    %v217 = vmul.f32 %v215, %v216
    %v218 = vmul.f32 %v136, %v136
    %v219 = vrot.slane %v218, 4
    %v220 = vadd.f32 %v218, %v219
    %v221 = vrot.slane %v220, 2
    %v222 = vadd.f32 %v220, %v221
    %v223 = vrot.slane %v222, 1
    %v224 = vadd.f32 %v222, %v223
    %v225 = vmul.f32 %v224, %v216
    %v226 = vmul.f32 %v217, %v217
    %v227 = vsub.f32 %v225, %v226
    %v228 = vmax.f32 %v227, 0.0
    %v229 = vld [vmem:[#allocation6] sm:$0x1]
    %v230 = vadd.f32 %v228, 1e-05
    %v231 = vrsqrt.pop %v230
    %v232 = vmul.f32 %v229, %v231
    %v233 = vld [vmem:[#allocation6 + $0x9] sm:$0x1]
    %v234 = vmul.f32 %v217, %v232
    %v235 = vsub.f32 %v233, %v234
    %v236 = vlaneseq
    %v237 = vshrl.u32 %v236, 7
    %v238 = vsub.s32 0, %v237
    %v239 = vrot.slane %v232, %v238
    %v240 = vmul.f32 %v136, %v239
    %v241 = vlaneseq
    %v242 = vshrl.u32 %v241, 7
    %v243 = vsub.s32 0, %v242
    %v244 = vrot.slane %v235, %v243
    %v245 = vadd.f32 %v240, %v244
    %v246 = vmax.f32 %v245, 0.0
    %v247 = vld [vmem:[#allocation4] sm:$0xff]
    %v248 = vld [vmem:[#allocation4 + $0x8] sm:$0xff]
    %v249 = vld [vmem:[#allocation4 + $0x10] sm:$0xff]
    %v250 = vld [vmem:[#allocation4 + $0x18] sm:$0xff]
    %vm251 = vcmask 261120
    %v253 = vsel %vm251, %v246, 0
    %255 = vmatprep.subr.mxu0 0.0
    %256 = vmatpush1.msra.mxu0 %v247
    %257 = vmatprep.subr.mxu0 0.0
    %258 = vmatpush1.msra.mxu0 %v248
    %259 = vmatprep.subr.mxu0 0.0
    %260 = vmatpush1.msra.mxu0 %v249
    %261 = vmatprep.subr.mxu0 0.0
    %262 = vmatpush1.msra.mxu0 %v250
    %263 = vmatprep.subr.mxu0 0.0
    %264 = vmatpush1.msra.mxu0 0.0
    %265 = vmatprep.subr.mxu0 0.0
    %266 = vmatpush1.msra.mxu0 0.0
    %267 = vmatprep.subr.mxu0 0.0
    %268 = vmatpush1.msra.mxu0 0.0
    %269 = vmatprep.subr.mxu0 0.0
    %270 = vmatpush1.msra.mxu0 0.0
    %271 = vmatprep.subr.mxu0 0.0
    %272 = vmatpush1.msra.mxu0 0.0
    %273 = vmatprep.subr.mxu0 0.0
    %274 = vmatpush1.msra.mxu0 0.0
    %275 = vmatprep.subr.mxu0 0.0
    %276 = vmatpush1.msra.mxu0 0.0
    %277 = vmatprep.subr.mxu0 0.0
    %278 = vmatpush1.msra.mxu0 0.0
    %279 = vmatprep.subr.mxu0 0.0
    %280 = vmatpush1.msra.mxu0 0.0
    %281 = vmatprep.subr.mxu0 0.0
    %282 = vmatpush1.msra.mxu0 0.0
    %283 = vmatprep.subr.mxu0 0.0
    %284 = vmatpush1.msra.mxu0 0.0
    %285 = vmatprep.subr.mxu0 0.0
    %286 = vmatpush1.msra.mxu0 0.0
    %287 = vmatprep.subr.mxu0 0.0
    %288 = vmatpush1.msra.mxu0 0.0
    %289 = vmatprep.subr.mxu0 0.0
    %290 = vmatpush1.msra.mxu0 0.0
    %291 = vmatprep.subr.mxu0 0.0
    %292 = vmatpush1.msra.mxu0 0.0
    %293 = vmatprep.subr.mxu0 0.0
    %294 = vmatpush1.msra.mxu0 0.0
    %295 = vmatprep.subr.mxu0 0.0
    %296 = vmatpush1.msra.mxu0 0.0
    %297 = vmatprep.subr.mxu0 0.0
    %298 = vmatpush1.msra.mxu0 0.0
    %299 = vmatprep.subr.mxu0 0.0
    %300 = vmatpush1.msra.mxu0 0.0
    %301 = vmatprep.subr.mxu0 0.0
    %302 = vmatpush1.msra.mxu0 0.0
    %303 = vmatprep.subr.mxu0 0.0
    %304 = vmatpush1.msra.mxu0 0.0
    %305 = vmatprep.subr.mxu0 0.0
    %306 = vmatpush1.msra.mxu0 0.0
    %307 = vmatprep.subr.mxu0 0.0
    %308 = vmatpush1.msra.mxu0 0.0
    %309 = vmatprep.subr.mxu0 0.0
    %310 = vmatpush1.msra.mxu0 0.0
    %311 = vmatprep.subr.mxu0 0.0
    %312 = vmatpush1.msra.mxu0 0.0
    %313 = vmatprep.subr.mxu0 0.0
    %314 = vmatpush1.msra.mxu0 0.0
    %315 = vmatprep.subr.mxu0 0.0
    %316 = vmatpush1.msra.mxu0 0.0
    %317 = vmatprep.subr.mxu0 0.0
    %318 = vmatpush1.msra.mxu0 0.0
    %319 = vmatprep.mubr.f32.mxu0 0.0
    %320 = vmatmul.mubr.f32.gmra.mrb[0].mxu0 %v253
    %v321 = vpop.f32.mrb[0].mxu0
    %v322 = vadd.f32 0.0, %v321
    %v323 = vpop.f32.mrb[0].mxu0
    %324 = vdwg.mxu0
    %v325 = vrot.slane %v322, 4
    %v326 = vadd.f32 %v322, %v325
    %v327 = vrot.slane %v326, 2
    %v328 = vadd.f32 %v326, %v327
    %v329 = vrot.slane %v328, 1
    %v330 = vadd.f32 %v328, %v329
    %v331 = vmul.f32 %v330, %v216
    %v332 = vmul.f32 %v322, %v322
    %v333 = vrot.slane %v332, 4
    %v334 = vadd.f32 %v332, %v333
    %v335 = vrot.slane %v334, 2
    %v336 = vadd.f32 %v334, %v335
    %v337 = vrot.slane %v336, 1
    %v338 = vadd.f32 %v336, %v337
    %v339 = vmul.f32 %v338, %v216
    %v340 = vmul.f32 %v331, %v331
    %v341 = vsub.f32 %v339, %v340
    %v342 = vmax.f32 %v341, 0.0
    %v343 = vld [vmem:[#allocation6 + $0x1] sm:$0x1]
    %v344 = vadd.f32 %v342, 1e-05
    %v345 = vrsqrt.pop %v344
    %v346 = vmul.f32 %v343, %v345
    %v347 = vld [vmem:[#allocation6 + $0xa] sm:$0x1]
    %v348 = vmul.f32 %v331, %v346
    %v349 = vsub.f32 %v347, %v348
    %v350 = vlaneseq
    %v351 = vshrl.u32 %v350, 7
    %v352 = vsub.s32 0, %v351
    %v353 = vrot.slane %v346, %v352
    %v354 = vmul.f32 %v322, %v353
    %v355 = vlaneseq
    %v356 = vshrl.u32 %v355, 7
    %v357 = vsub.s32 0, %v356
    %v358 = vrot.slane %v349, %v357
    %v359 = vadd.f32 %v354, %v358
    %v360 = vmax.f32 %v359, 0.0
    %s361 = scalar_lea.vmem [#allocation4], 32
    %v362 = vld [vmem:[%s361] sm:$0xff]
    %v363 = vld [vmem:[%s361 + $0x8] sm:$0xff]
    %v364 = vld [vmem:[%s361 + $0x10] sm:$0xff]
    %v365 = vld [vmem:[%s361 + $0x18] sm:$0xff]
    %v367 = vsel %vm251, %v360, 0
    %369 = vmatprep.subr.mxu0 0.0
    %370 = vmatpush1.msra.mxu0 %v362
    %371 = vmatprep.subr.mxu0 0.0
    %372 = vmatpush1.msra.mxu0 %v363
    %373 = vmatprep.subr.mxu0 0.0
    %374 = vmatpush1.msra.mxu0 %v364
    %375 = vmatprep.subr.mxu0 0.0
    %376 = vmatpush1.msra.mxu0 %v365
    %377 = vmatprep.subr.mxu0 0.0
    %378 = vmatpush1.msra.mxu0 0.0
    %379 = vmatprep.subr.mxu0 0.0
    %380 = vmatpush1.msra.mxu0 0.0
    %381 = vmatprep.subr.mxu0 0.0
    %382 = vmatpush1.msra.mxu0 0.0
    %383 = vmatprep.subr.mxu0 0.0
    %384 = vmatpush1.msra.mxu0 0.0
    %385 = vmatprep.subr.mxu0 0.0
    %386 = vmatpush1.msra.mxu0 0.0
    %387 = vmatprep.subr.mxu0 0.0
    %388 = vmatpush1.msra.mxu0 0.0
    %389 = vmatprep.subr.mxu0 0.0
    %390 = vmatpush1.msra.mxu0 0.0
    %391 = vmatprep.subr.mxu0 0.0
    %392 = vmatpush1.msra.mxu0 0.0
    %393 = vmatprep.subr.mxu0 0.0
    %394 = vmatpush1.msra.mxu0 0.0
    %395 = vmatprep.subr.mxu0 0.0
    %396 = vmatpush1.msra.mxu0 0.0
    %397 = vmatprep.subr.mxu0 0.0
    %398 = vmatpush1.msra.mxu0 0.0
    %399 = vmatprep.subr.mxu0 0.0
    %400 = vmatpush1.msra.mxu0 0.0
    %401 = vmatprep.subr.mxu0 0.0
    %402 = vmatpush1.msra.mxu0 0.0
    %403 = vmatprep.subr.mxu0 0.0
    %404 = vmatpush1.msra.mxu0 0.0
    %405 = vmatprep.subr.mxu0 0.0
    %406 = vmatpush1.msra.mxu0 0.0
    %407 = vmatprep.subr.mxu0 0.0
    %408 = vmatpush1.msra.mxu0 0.0
    %409 = vmatprep.subr.mxu0 0.0
    %410 = vmatpush1.msra.mxu0 0.0
    %411 = vmatprep.subr.mxu0 0.0
    %412 = vmatpush1.msra.mxu0 0.0
    %413 = vmatprep.subr.mxu0 0.0
    %414 = vmatpush1.msra.mxu0 0.0
    %415 = vmatprep.subr.mxu0 0.0
    %416 = vmatpush1.msra.mxu0 0.0
    %417 = vmatprep.subr.mxu0 0.0
    %418 = vmatpush1.msra.mxu0 0.0
    %419 = vmatprep.subr.mxu0 0.0
    %420 = vmatpush1.msra.mxu0 0.0
    %421 = vmatprep.subr.mxu0 0.0
    %422 = vmatpush1.msra.mxu0 0.0
    %423 = vmatprep.subr.mxu0 0.0
    %424 = vmatpush1.msra.mxu0 0.0
    %425 = vmatprep.subr.mxu0 0.0
    %426 = vmatpush1.msra.mxu0 0.0
    %427 = vmatprep.subr.mxu0 0.0
    %428 = vmatpush1.msra.mxu0 0.0
    %429 = vmatprep.subr.mxu0 0.0
    %430 = vmatpush1.msra.mxu0 0.0
    %431 = vmatprep.subr.mxu0 0.0
    %432 = vmatpush1.msra.mxu0 0.0
    %433 = vmatprep.mubr.f32.mxu0 0.0
    %434 = vmatmul.mubr.f32.gmra.mrb[0].mxu0 %v367
    %v435 = vpop.f32.mrb[0].mxu0
    %v436 = vadd.f32 0.0, %v435
    %v437 = vpop.f32.mrb[0].mxu0
    %438 = vdwg.mxu0
    %v439 = vrot.slane %v436, 4
    %v440 = vadd.f32 %v436, %v439
    %v441 = vrot.slane %v440, 2
    %v442 = vadd.f32 %v440, %v441
    %v443 = vrot.slane %v442, 1
    %v444 = vadd.f32 %v442, %v443
    %v445 = vmul.f32 %v444, %v216
    %v446 = vmul.f32 %v436, %v436
    %v447 = vrot.slane %v446, 4
    %v448 = vadd.f32 %v446, %v447
    %v449 = vrot.slane %v448, 2
    %v450 = vadd.f32 %v448, %v449
    %v451 = vrot.slane %v450, 1
    %v452 = vadd.f32 %v450, %v451
    %v453 = vmul.f32 %v452, %v216
    %v454 = vmul.f32 %v445, %v445
    %v455 = vsub.f32 %v453, %v454
    %v456 = vmax.f32 %v455, 0.0
    %v457 = vld [vmem:[#allocation6 + $0x2] sm:$0x1]
    %v458 = vadd.f32 %v456, 1e-05
    %v459 = vrsqrt.pop %v458
    %v460 = vmul.f32 %v457, %v459
    %v461 = vld [vmem:[#allocation6 + $0xb] sm:$0x1]
    %v462 = vmul.f32 %v445, %v460
    %v463 = vsub.f32 %v461, %v462
    %v464 = vlaneseq
    %v465 = vshrl.u32 %v464, 7
    %v466 = vsub.s32 0, %v465
    %v467 = vrot.slane %v460, %v466
    %v468 = vmul.f32 %v436, %v467
    %v469 = vlaneseq
    %v470 = vshrl.u32 %v469, 7
    %v471 = vsub.s32 0, %v470
    %v472 = vrot.slane %v463, %v471
    %v473 = vadd.f32 %v468, %v472
    %v474 = vmax.f32 %v473, 0.0
    %s475 = scalar_lea.vmem [#allocation4], 64
    %v476 = vld [vmem:[%s475] sm:$0xff]
    %v477 = vld [vmem:[%s475 + $0x8] sm:$0xff]
    %v478 = vld [vmem:[%s475 + $0x10] sm:$0xff]
    %v479 = vld [vmem:[%s475 + $0x18] sm:$0xff]
    %v480 = vld [vmem:[#allocation6 + $0x12] sm:$0x1]
    %v481 = vlaneseq
    %v482 = vshrl.u32 %v481, 7
    %v483 = vsub.s32 0, %v482
    %v484 = vrot.slane %v480, %v483
    %v486 = vsel %vm251, %v474, 0
    %488 = vmatprep.subr.mxu0 0.0
    %489 = vmatpush1.msra.mxu0 %v476
    %490 = vmatprep.subr.mxu0 0.0
    %491 = vmatpush1.msra.mxu0 %v477
    %492 = vmatprep.subr.mxu0 0.0
    %493 = vmatpush1.msra.mxu0 %v478
    %494 = vmatprep.subr.mxu0 0.0
    %495 = vmatpush1.msra.mxu0 %v479
    %496 = vmatprep.subr.mxu0 0.0
    %497 = vmatpush1.msra.mxu0 0.0
    %498 = vmatprep.subr.mxu0 0.0
    %499 = vmatpush1.msra.mxu0 0.0
    %500 = vmatprep.subr.mxu0 0.0
    %501 = vmatpush1.msra.mxu0 0.0
    %502 = vmatprep.subr.mxu0 0.0
    %503 = vmatpush1.msra.mxu0 0.0
    %504 = vmatprep.subr.mxu0 0.0
    %505 = vmatpush1.msra.mxu0 0.0
    %506 = vmatprep.subr.mxu0 0.0
    %507 = vmatpush1.msra.mxu0 0.0
    %508 = vmatprep.subr.mxu0 0.0
    %509 = vmatpush1.msra.mxu0 0.0
    %510 = vmatprep.subr.mxu0 0.0
    %511 = vmatpush1.msra.mxu0 0.0
    %512 = vmatprep.subr.mxu0 0.0
    %513 = vmatpush1.msra.mxu0 0.0
    %514 = vmatprep.subr.mxu0 0.0
    %515 = vmatpush1.msra.mxu0 0.0
    %516 = vmatprep.subr.mxu0 0.0
    %517 = vmatpush1.msra.mxu0 0.0
    %518 = vmatprep.subr.mxu0 0.0
    %519 = vmatpush1.msra.mxu0 0.0
    %520 = vmatprep.subr.mxu0 0.0
    %521 = vmatpush1.msra.mxu0 0.0
    %522 = vmatprep.subr.mxu0 0.0
    %523 = vmatpush1.msra.mxu0 0.0
    %524 = vmatprep.subr.mxu0 0.0
    %525 = vmatpush1.msra.mxu0 0.0
    %526 = vmatprep.subr.mxu0 0.0
    %527 = vmatpush1.msra.mxu0 0.0
    %528 = vmatprep.subr.mxu0 0.0
    %529 = vmatpush1.msra.mxu0 0.0
    %530 = vmatprep.subr.mxu0 0.0
    %531 = vmatpush1.msra.mxu0 0.0
    %532 = vmatprep.subr.mxu0 0.0
    %533 = vmatpush1.msra.mxu0 0.0
    %534 = vmatprep.subr.mxu0 0.0
    %535 = vmatpush1.msra.mxu0 0.0
    %536 = vmatprep.subr.mxu0 0.0
    %537 = vmatpush1.msra.mxu0 0.0
    %538 = vmatprep.subr.mxu0 0.0
    %539 = vmatpush1.msra.mxu0 0.0
    %540 = vmatprep.subr.mxu0 0.0
    %541 = vmatpush1.msra.mxu0 0.0
    %542 = vmatprep.subr.mxu0 0.0
    %543 = vmatpush1.msra.mxu0 0.0
    %544 = vmatprep.subr.mxu0 0.0
    %545 = vmatpush1.msra.mxu0 0.0
    %546 = vmatprep.subr.mxu0 0.0
    %547 = vmatpush1.msra.mxu0 0.0
    %548 = vmatprep.subr.mxu0 0.0
    %549 = vmatpush1.msra.mxu0 0.0
    %550 = vmatprep.subr.mxu0 0.0
    %551 = vmatpush1.msra.mxu0 0.0
    %552 = vmatprep.mubr.f32.mxu0 0.0
    %553 = vmatmul.mubr.f32.gmra.mrb[0].mxu0 %v486
    %v554 = vpop.f32.mrb[0].mxu0
    %v555 = vadd.f32 %v484, %v554
    %v556 = vpop.f32.mrb[0].mxu0
    %557 = vdwg.mxu0
    %558 = vst [vmem:[%s4] sm:$0xff] %v555
    %s559 = scalar_lea.vmem [#allocation4], 96
    %v560 = vld [vmem:[%s559] sm:$0xff]
    %v561 = vld [vmem:[%s559 + $0x8] sm:$0xff]
    %v562 = vld [vmem:[%s559 + $0x10] sm:$0xff]
    %v563 = vld [vmem:[%s559 + $0x18] sm:$0xff]
    %v565 = vsel %vm251, %v555, 0
    %567 = vmatprep.subr.mxu0 0.0
    %568 = vmatpush1.msra.mxu0 %v560
    %569 = vmatprep.subr.mxu0 0.0
    %570 = vmatpush1.msra.mxu0 %v561
    %571 = vmatprep.subr.mxu0 0.0
    %572 = vmatpush1.msra.mxu0 %v562
    %573 = vmatprep.subr.mxu0 0.0
    %574 = vmatpush1.msra.mxu0 %v563
    %575 = vmatprep.subr.mxu0 0.0
    %576 = vmatpush1.msra.mxu0 0.0
    %577 = vmatprep.subr.mxu0 0.0
    %578 = vmatpush1.msra.mxu0 0.0
    %579 = vmatprep.subr.mxu0 0.0
    %580 = vmatpush1.msra.mxu0 0.0
    %581 = vmatprep.subr.mxu0 0.0
    %582 = vmatpush1.msra.mxu0 0.0
    %583 = vmatprep.subr.mxu0 0.0
    %584 = vmatpush1.msra.mxu0 0.0
    %585 = vmatprep.subr.mxu0 0.0
    %586 = vmatpush1.msra.mxu0 0.0
    %587 = vmatprep.subr.mxu0 0.0
    %588 = vmatpush1.msra.mxu0 0.0
    %589 = vmatprep.subr.mxu0 0.0
    %590 = vmatpush1.msra.mxu0 0.0
    %591 = vmatprep.subr.mxu0 0.0
    %592 = vmatpush1.msra.mxu0 0.0
    %593 = vmatprep.subr.mxu0 0.0
    %594 = vmatpush1.msra.mxu0 0.0
    %595 = vmatprep.subr.mxu0 0.0
    %596 = vmatpush1.msra.mxu0 0.0
    %597 = vmatprep.subr.mxu0 0.0
    %598 = vmatpush1.msra.mxu0 0.0
    %599 = vmatprep.subr.mxu0 0.0
    %600 = vmatpush1.msra.mxu0 0.0
    %601 = vmatprep.subr.mxu0 0.0
    %602 = vmatpush1.msra.mxu0 0.0
    %603 = vmatprep.subr.mxu0 0.0
    %604 = vmatpush1.msra.mxu0 0.0
    %605 = vmatprep.subr.mxu0 0.0
    %606 = vmatpush1.msra.mxu0 0.0
    %607 = vmatprep.subr.mxu0 0.0
    %608 = vmatpush1.msra.mxu0 0.0
    %609 = vmatprep.subr.mxu0 0.0
    %610 = vmatpush1.msra.mxu0 0.0
    %611 = vmatprep.subr.mxu0 0.0
    %612 = vmatpush1.msra.mxu0 0.0
    %613 = vmatprep.subr.mxu0 0.0
    %614 = vmatpush1.msra.mxu0 0.0
    %615 = vmatprep.subr.mxu0 0.0
    %616 = vmatpush1.msra.mxu0 0.0
    %617 = vmatprep.subr.mxu0 0.0
    %618 = vmatpush1.msra.mxu0 0.0
    %619 = vmatprep.subr.mxu0 0.0
    %620 = vmatpush1.msra.mxu0 0.0
    %621 = vmatprep.subr.mxu0 0.0
    %622 = vmatpush1.msra.mxu0 0.0
    %623 = vmatprep.subr.mxu0 0.0
    %624 = vmatpush1.msra.mxu0 0.0
    %625 = vmatprep.subr.mxu0 0.0
    %626 = vmatpush1.msra.mxu0 0.0
    %627 = vmatprep.subr.mxu0 0.0
    %628 = vmatpush1.msra.mxu0 0.0
    %629 = vmatprep.subr.mxu0 0.0
    %630 = vmatpush1.msra.mxu0 0.0
    %631 = vmatprep.mubr.f32.mxu0 0.0
    %632 = vmatmul.mubr.f32.gmra.mrb[0].mxu0 %v565
    %v633 = vpop.f32.mrb[0].mxu0
    %v634 = vadd.f32 %v138, %v633
    %v635 = vpop.f32.mrb[0].mxu0
    %636 = vdwg.mxu0
    %v637 = vrot.slane %v634, 4
    %v638 = vadd.f32 %v634, %v637
    %v639 = vrot.slane %v638, 2
    %v640 = vadd.f32 %v638, %v639
    %v641 = vrot.slane %v640, 1
    %v642 = vadd.f32 %v640, %v641
    %v643 = vmul.f32 %v642, %v216
    %v644 = vmul.f32 %v634, %v634
    %v645 = vrot.slane %v644, 4
    %v646 = vadd.f32 %v644, %v645
    %v647 = vrot.slane %v646, 2
    %v648 = vadd.f32 %v646, %v647
    %v649 = vrot.slane %v648, 1
    %v650 = vadd.f32 %v648, %v649
    %v651 = vmul.f32 %v650, %v216
    %v652 = vmul.f32 %v643, %v643
    %v653 = vsub.f32 %v651, %v652
    %v654 = vmax.f32 %v653, 0.0
    %v655 = vld [vmem:[#allocation6 + $0x3] sm:$0x1]
    %v656 = vadd.f32 %v654, 1e-05
    %v657 = vrsqrt.pop %v656
    %v658 = vmul.f32 %v655, %v657
    %v659 = vld [vmem:[#allocation6 + $0xc] sm:$0x1]
    %v660 = vmul.f32 %v643, %v658
    %v661 = vsub.f32 %v659, %v660
    %v662 = vlaneseq
    %v663 = vshrl.u32 %v662, 7
    %v664 = vsub.s32 0, %v663
    %v665 = vrot.slane %v658, %v664
    %v666 = vmul.f32 %v634, %v665
    %v667 = vlaneseq
    %v668 = vshrl.u32 %v667, 7
    %v669 = vsub.s32 0, %v668
    %v670 = vrot.slane %v661, %v669
    %v671 = vadd.f32 %v666, %v670
    %v672 = vmax.f32 %v671, 0.0
    %s673 = scalar_lea.vmem [#allocation4], 128
    %v674 = vld [vmem:[%s673] sm:$0xff]
    %v675 = vld [vmem:[%s673 + $0x8] sm:$0xff]
    %v676 = vld [vmem:[%s673 + $0x10] sm:$0xff]
    %v677 = vld [vmem:[%s673 + $0x18] sm:$0xff]
    %v679 = vsel %vm251, %v672, 0
    %681 = vmatprep.subr.mxu0 0.0
    %682 = vmatpush1.msra.mxu0 %v674
    %683 = vmatprep.subr.mxu0 0.0
    %684 = vmatpush1.msra.mxu0 %v675
    %685 = vmatprep.subr.mxu0 0.0
    %686 = vmatpush1.msra.mxu0 %v676
    %687 = vmatprep.subr.mxu0 0.0
    %688 = vmatpush1.msra.mxu0 %v677
    %689 = vmatprep.subr.mxu0 0.0
    %690 = vmatpush1.msra.mxu0 0.0
    %691 = vmatprep.subr.mxu0 0.0
    %692 = vmatpush1.msra.mxu0 0.0
    %693 = vmatprep.subr.mxu0 0.0
    %694 = vmatpush1.msra.mxu0 0.0
    %695 = vmatprep.subr.mxu0 0.0
    %696 = vmatpush1.msra.mxu0 0.0
    %697 = vmatprep.subr.mxu0 0.0
    %698 = vmatpush1.msra.mxu0 0.0
    %699 = vmatprep.subr.mxu0 0.0
    %700 = vmatpush1.msra.mxu0 0.0
    %701 = vmatprep.subr.mxu0 0.0
    %702 = vmatpush1.msra.mxu0 0.0
    %703 = vmatprep.subr.mxu0 0.0
    %704 = vmatpush1.msra.mxu0 0.0
    %705 = vmatprep.subr.mxu0 0.0
    %706 = vmatpush1.msra.mxu0 0.0
    %707 = vmatprep.subr.mxu0 0.0
    %708 = vmatpush1.msra.mxu0 0.0
    %709 = vmatprep.subr.mxu0 0.0
    %710 = vmatpush1.msra.mxu0 0.0
    %711 = vmatprep.subr.mxu0 0.0
    %712 = vmatpush1.msra.mxu0 0.0
    %713 = vmatprep.subr.mxu0 0.0
    %714 = vmatpush1.msra.mxu0 0.0
    %715 = vmatprep.subr.mxu0 0.0
    %716 = vmatpush1.msra.mxu0 0.0
    %717 = vmatprep.subr.mxu0 0.0
    %718 = vmatpush1.msra.mxu0 0.0
    %719 = vmatprep.subr.mxu0 0.0
    %720 = vmatpush1.msra.mxu0 0.0
    %721 = vmatprep.subr.mxu0 0.0
    %722 = vmatpush1.msra.mxu0 0.0
    %723 = vmatprep.subr.mxu0 0.0
    %724 = vmatpush1.msra.mxu0 0.0
    %725 = vmatprep.subr.mxu0 0.0
    %726 = vmatpush1.msra.mxu0 0.0
    %727 = vmatprep.subr.mxu0 0.0
    %728 = vmatpush1.msra.mxu0 0.0
    %729 = vmatprep.subr.mxu0 0.0
    %730 = vmatpush1.msra.mxu0 0.0
    %731 = vmatprep.subr.mxu0 0.0
    %732 = vmatpush1.msra.mxu0 0.0
    %733 = vmatprep.subr.mxu0 0.0
    %734 = vmatpush1.msra.mxu0 0.0
    %735 = vmatprep.subr.mxu0 0.0
    %736 = vmatpush1.msra.mxu0 0.0
    %737 = vmatprep.subr.mxu0 0.0
    %738 = vmatpush1.msra.mxu0 0.0
    %739 = vmatprep.subr.mxu0 0.0
    %740 = vmatpush1.msra.mxu0 0.0
    %741 = vmatprep.subr.mxu0 0.0
    %742 = vmatpush1.msra.mxu0 0.0
    %743 = vmatprep.subr.mxu0 0.0
    %744 = vmatpush1.msra.mxu0 0.0
    %745 = vmatprep.mubr.f32.mxu0 0.0
    %746 = vmatmul.mubr.f32.gmra.mrb[0].mxu0 %v679
    %v747 = vpop.f32.mrb[0].mxu0
    %v748 = vadd.f32 0.0, %v747
    %v749 = vpop.f32.mrb[0].mxu0
    %750 = vdwg.mxu0
    %v751 = vrot.slane %v748, 4
    %v752 = vadd.f32 %v748, %v751
    %v753 = vrot.slane %v752, 2
    %v754 = vadd.f32 %v752, %v753
    %v755 = vrot.slane %v754, 1
    %v756 = vadd.f32 %v754, %v755
    %v757 = vmul.f32 %v756, %v216
    %v758 = vmul.f32 %v748, %v748
    %v759 = vrot.slane %v758, 4
    %v760 = vadd.f32 %v758, %v759
    %v761 = vrot.slane %v760, 2
    %v762 = vadd.f32 %v760, %v761
    %v763 = vrot.slane %v762, 1
    %v764 = vadd.f32 %v762, %v763
    %v765 = vmul.f32 %v764, %v216
    %v766 = vmul.f32 %v757, %v757
    %v767 = vsub.f32 %v765, %v766
    %v768 = vmax.f32 %v767, 0.0
    %v769 = vld [vmem:[#allocation6 + $0x4] sm:$0x1]
    %v770 = vadd.f32 %v768, 1e-05
    %v771 = vrsqrt.pop %v770
    %v772 = vmul.f32 %v769, %v771
    %v773 = vld [vmem:[#allocation6 + $0xd] sm:$0x1]
    %v774 = vmul.f32 %v757, %v772
    %v775 = vsub.f32 %v773, %v774
    %v776 = vlaneseq
    %v777 = vshrl.u32 %v776, 7
    %v778 = vsub.s32 0, %v777
    %v779 = vrot.slane %v772, %v778
    %v780 = vmul.f32 %v748, %v779
    %v781 = vlaneseq
    %v782 = vshrl.u32 %v781, 7
    %v783 = vsub.s32 0, %v782
    %v784 = vrot.slane %v775, %v783
    %v785 = vadd.f32 %v780, %v784
    %v786 = vmax.f32 %v785, 0.0
    %s787 = scalar_lea.vmem [#allocation4], 160
    %v788 = vld [vmem:[%s787] sm:$0xff]
    %v789 = vld [vmem:[%s787 + $0x8] sm:$0xff]
    %v790 = vld [vmem:[%s787 + $0x10] sm:$0xff]
    %v791 = vld [vmem:[%s787 + $0x18] sm:$0xff]
    %v793 = vsel %vm251, %v786, 0
    %795 = vmatprep.subr.mxu0 0.0
    %796 = vmatpush1.msra.mxu0 %v788
    %797 = vmatprep.subr.mxu0 0.0
    %798 = vmatpush1.msra.mxu0 %v789
    %799 = vmatprep.subr.mxu0 0.0
    %800 = vmatpush1.msra.mxu0 %v790
    %801 = vmatprep.subr.mxu0 0.0
    %802 = vmatpush1.msra.mxu0 %v791
    %803 = vmatprep.subr.mxu0 0.0
    %804 = vmatpush1.msra.mxu0 0.0
    %805 = vmatprep.subr.mxu0 0.0
    %806 = vmatpush1.msra.mxu0 0.0
    %807 = vmatprep.subr.mxu0 0.0
    %808 = vmatpush1.msra.mxu0 0.0
    %809 = vmatprep.subr.mxu0 0.0
    %810 = vmatpush1.msra.mxu0 0.0
    %811 = vmatprep.subr.mxu0 0.0
    %812 = vmatpush1.msra.mxu0 0.0
    %813 = vmatprep.subr.mxu0 0.0
    %814 = vmatpush1.msra.mxu0 0.0
    %815 = vmatprep.subr.mxu0 0.0
    %816 = vmatpush1.msra.mxu0 0.0
    %817 = vmatprep.subr.mxu0 0.0
    %818 = vmatpush1.msra.mxu0 0.0
    %819 = vmatprep.subr.mxu0 0.0
    %820 = vmatpush1.msra.mxu0 0.0
    %821 = vmatprep.subr.mxu0 0.0
    %822 = vmatpush1.msra.mxu0 0.0
    %823 = vmatprep.subr.mxu0 0.0
    %824 = vmatpush1.msra.mxu0 0.0
    %825 = vmatprep.subr.mxu0 0.0
    %826 = vmatpush1.msra.mxu0 0.0
    %827 = vmatprep.subr.mxu0 0.0
    %828 = vmatpush1.msra.mxu0 0.0
    %829 = vmatprep.subr.mxu0 0.0
    %830 = vmatpush1.msra.mxu0 0.0
    %831 = vmatprep.subr.mxu0 0.0
    %832 = vmatpush1.msra.mxu0 0.0
    %833 = vmatprep.subr.mxu0 0.0
    %834 = vmatpush1.msra.mxu0 0.0
    %835 = vmatprep.subr.mxu0 0.0
    %836 = vmatpush1.msra.mxu0 0.0
    %837 = vmatprep.subr.mxu0 0.0
    %838 = vmatpush1.msra.mxu0 0.0
    %839 = vmatprep.subr.mxu0 0.0
    %840 = vmatpush1.msra.mxu0 0.0
    %841 = vmatprep.subr.mxu0 0.0
    %842 = vmatpush1.msra.mxu0 0.0
    %843 = vmatprep.subr.mxu0 0.0
    %844 = vmatpush1.msra.mxu0 0.0
    %845 = vmatprep.subr.mxu0 0.0
    %846 = vmatpush1.msra.mxu0 0.0
    %847 = vmatprep.subr.mxu0 0.0
    %848 = vmatpush1.msra.mxu0 0.0
    %849 = vmatprep.subr.mxu0 0.0
    %850 = vmatpush1.msra.mxu0 0.0
    %851 = vmatprep.subr.mxu0 0.0
    %852 = vmatpush1.msra.mxu0 0.0
    %853 = vmatprep.subr.mxu0 0.0
    %854 = vmatpush1.msra.mxu0 0.0
    %855 = vmatprep.subr.mxu0 0.0
    %856 = vmatpush1.msra.mxu0 0.0
    %857 = vmatprep.subr.mxu0 0.0
    %858 = vmatpush1.msra.mxu0 0.0
    %859 = vmatprep.mubr.f32.mxu0 0.0
    %860 = vmatmul.mubr.f32.gmra.mrb[0].mxu0 %v793
    %v861 = vpop.f32.mrb[0].mxu0
    %v862 = vadd.f32 0.0, %v861
    %v863 = vpop.f32.mrb[0].mxu0
    %864 = vdwg.mxu0
    %v865 = vrot.slane %v862, 4
    %v866 = vadd.f32 %v862, %v865
    %v867 = vrot.slane %v866, 2
    %v868 = vadd.f32 %v866, %v867
    %v869 = vrot.slane %v868, 1
    %v870 = vadd.f32 %v868, %v869
    %v871 = vmul.f32 %v870, %v216
    %v872 = vmul.f32 %v862, %v862
    %v873 = vrot.slane %v872, 4
    %v874 = vadd.f32 %v872, %v873
    %v875 = vrot.slane %v874, 2
    %v876 = vadd.f32 %v874, %v875
    %v877 = vrot.slane %v876, 1
    %v878 = vadd.f32 %v876, %v877
    %v879 = vmul.f32 %v878, %v216
    %v880 = vmul.f32 %v871, %v871
    %v881 = vsub.f32 %v879, %v880
    %v882 = vmax.f32 %v881, 0.0
    %v883 = vld [vmem:[#allocation6 + $0x5] sm:$0x1]
    %v884 = vadd.f32 %v882, 1e-05
    %v885 = vrsqrt.pop %v884
    %v886 = vmul.f32 %v883, %v885
    %v887 = vld [vmem:[#allocation6 + $0xe] sm:$0x1]
    %v888 = vmul.f32 %v871, %v886
    %v889 = vsub.f32 %v887, %v888
    %v890 = vlaneseq
    %v891 = vshrl.u32 %v890, 7
    %v892 = vsub.s32 0, %v891
    %v893 = vrot.slane %v886, %v892
    %v894 = vmul.f32 %v862, %v893
    %v895 = vlaneseq
    %v896 = vshrl.u32 %v895, 7
    %v897 = vsub.s32 0, %v896
    %v898 = vrot.slane %v889, %v897
    %v899 = vadd.f32 %v894, %v898
    %v900 = vmax.f32 %v899, 0.0
    %s901 = scalar_lea.vmem [#allocation4], 192
    %v902 = vld [vmem:[%s901] sm:$0xff]
    %v903 = vld [vmem:[%s901 + $0x8] sm:$0xff]
    %v904 = vld [vmem:[%s901 + $0x10] sm:$0xff]
    %v905 = vld [vmem:[%s901 + $0x18] sm:$0xff]
    %v906 = vld [vmem:[#allocation6 + $0x13] sm:$0x1]
    %v907 = vlaneseq
    %v908 = vshrl.u32 %v907, 7
    %v909 = vsub.s32 0, %v908
    %v910 = vrot.slane %v906, %v909
    %v912 = vsel %vm251, %v900, 0
    %914 = vmatprep.subr.mxu0 0.0
    %915 = vmatpush1.msra.mxu0 %v902
    %916 = vmatprep.subr.mxu0 0.0
    %917 = vmatpush1.msra.mxu0 %v903
    %918 = vmatprep.subr.mxu0 0.0
    %919 = vmatpush1.msra.mxu0 %v904
    %920 = vmatprep.subr.mxu0 0.0
    %921 = vmatpush1.msra.mxu0 %v905
    %922 = vmatprep.subr.mxu0 0.0
    %923 = vmatpush1.msra.mxu0 0.0
    %924 = vmatprep.subr.mxu0 0.0
    %925 = vmatpush1.msra.mxu0 0.0
    %926 = vmatprep.subr.mxu0 0.0
    %927 = vmatpush1.msra.mxu0 0.0
    %928 = vmatprep.subr.mxu0 0.0
    %929 = vmatpush1.msra.mxu0 0.0
    %930 = vmatprep.subr.mxu0 0.0
    %931 = vmatpush1.msra.mxu0 0.0
    %932 = vmatprep.subr.mxu0 0.0
    %933 = vmatpush1.msra.mxu0 0.0
    %934 = vmatprep.subr.mxu0 0.0
    %935 = vmatpush1.msra.mxu0 0.0
    %936 = vmatprep.subr.mxu0 0.0
    %937 = vmatpush1.msra.mxu0 0.0
    %938 = vmatprep.subr.mxu0 0.0
    %939 = vmatpush1.msra.mxu0 0.0
    %940 = vmatprep.subr.mxu0 0.0
    %941 = vmatpush1.msra.mxu0 0.0
    %942 = vmatprep.subr.mxu0 0.0
    %943 = vmatpush1.msra.mxu0 0.0
    %944 = vmatprep.subr.mxu0 0.0
    %945 = vmatpush1.msra.mxu0 0.0
    %946 = vmatprep.subr.mxu0 0.0
    %947 = vmatpush1.msra.mxu0 0.0
    %948 = vmatprep.subr.mxu0 0.0
    %949 = vmatpush1.msra.mxu0 0.0
    %950 = vmatprep.subr.mxu0 0.0
    %951 = vmatpush1.msra.mxu0 0.0
    %952 = vmatprep.subr.mxu0 0.0
    %953 = vmatpush1.msra.mxu0 0.0
    %954 = vmatprep.subr.mxu0 0.0
    %955 = vmatpush1.msra.mxu0 0.0
    %956 = vmatprep.subr.mxu0 0.0
    %957 = vmatpush1.msra.mxu0 0.0
    %958 = vmatprep.subr.mxu0 0.0
    %959 = vmatpush1.msra.mxu0 0.0
    %960 = vmatprep.subr.mxu0 0.0
    %961 = vmatpush1.msra.mxu0 0.0
    %962 = vmatprep.subr.mxu0 0.0
    %963 = vmatpush1.msra.mxu0 0.0
    %964 = vmatprep.subr.mxu0 0.0
    %965 = vmatpush1.msra.mxu0 0.0
    %966 = vmatprep.subr.mxu0 0.0
    %967 = vmatpush1.msra.mxu0 0.0
    %968 = vmatprep.subr.mxu0 0.0
    %969 = vmatpush1.msra.mxu0 0.0
    %970 = vmatprep.subr.mxu0 0.0
    %971 = vmatpush1.msra.mxu0 0.0
    %972 = vmatprep.subr.mxu0 0.0
    %973 = vmatpush1.msra.mxu0 0.0
    %974 = vmatprep.subr.mxu0 0.0
    %975 = vmatpush1.msra.mxu0 0.0
    %976 = vmatprep.subr.mxu0 0.0
    %977 = vmatpush1.msra.mxu0 0.0
    %978 = vmatprep.mubr.f32.mxu0 0.0
    %979 = vmatmul.mubr.f32.gmra.mrb[0].mxu0 %v912
    %v980 = vpop.f32.mrb[0].mxu0
    %v981 = vadd.f32 %v910, %v980
    %v982 = vpop.f32.mrb[0].mxu0
    %983 = vdwg.mxu0
    %s984 = scalar_lea.vmem %s4, 8
    %985 = vst [vmem:[%s984] sm:$0xff] %v981
    %s986 = scalar_lea.vmem [#allocation4], 224
    %v987 = vld [vmem:[%s986] sm:$0xff]
    %v988 = vld [vmem:[%s986 + $0x8] sm:$0xff]
    %v989 = vld [vmem:[%s986 + $0x10] sm:$0xff]
    %v990 = vld [vmem:[%s986 + $0x18] sm:$0xff]
    %v992 = vsel %vm251, %v981, 0
    %994 = vmatprep.subr.mxu0 0.0
    %995 = vmatpush1.msra.mxu0 %v987
    %996 = vmatprep.subr.mxu0 0.0
    %997 = vmatpush1.msra.mxu0 %v988
    %998 = vmatprep.subr.mxu0 0.0
    %999 = vmatpush1.msra.mxu0 %v989
    %1000 = vmatprep.subr.mxu0 0.0
    %1001 = vmatpush1.msra.mxu0 %v990
    %1002 = vmatprep.subr.mxu0 0.0
    %1003 = vmatpush1.msra.mxu0 0.0
    %1004 = vmatprep.subr.mxu0 0.0
    %1005 = vmatpush1.msra.mxu0 0.0
    %1006 = vmatprep.subr.mxu0 0.0
    %1007 = vmatpush1.msra.mxu0 0.0
    %1008 = vmatprep.subr.mxu0 0.0
    %1009 = vmatpush1.msra.mxu0 0.0
    %1010 = vmatprep.subr.mxu0 0.0
    %1011 = vmatpush1.msra.mxu0 0.0
    %1012 = vmatprep.subr.mxu0 0.0
    %1013 = vmatpush1.msra.mxu0 0.0
    %1014 = vmatprep.subr.mxu0 0.0
    %1015 = vmatpush1.msra.mxu0 0.0
    %1016 = vmatprep.subr.mxu0 0.0
    %1017 = vmatpush1.msra.mxu0 0.0
    %1018 = vmatprep.subr.mxu0 0.0
    %1019 = vmatpush1.msra.mxu0 0.0
    %1020 = vmatprep.subr.mxu0 0.0
    %1021 = vmatpush1.msra.mxu0 0.0
    %1022 = vmatprep.subr.mxu0 0.0
    %1023 = vmatpush1.msra.mxu0 0.0
    %1024 = vmatprep.subr.mxu0 0.0
    %1025 = vmatpush1.msra.mxu0 0.0
    %1026 = vmatprep.subr.mxu0 0.0
    %1027 = vmatpush1.msra.mxu0 0.0
    %1028 = vmatprep.subr.mxu0 0.0
    %1029 = vmatpush1.msra.mxu0 0.0
    %1030 = vmatprep.subr.mxu0 0.0
    %1031 = vmatpush1.msra.mxu0 0.0
    %1032 = vmatprep.subr.mxu0 0.0
    %1033 = vmatpush1.msra.mxu0 0.0
    %1034 = vmatprep.subr.mxu0 0.0
    %1035 = vmatpush1.msra.mxu0 0.0
    %1036 = vmatprep.subr.mxu0 0.0
    %1037 = vmatpush1.msra.mxu0 0.0
    %1038 = vmatprep.subr.mxu0 0.0
    %1039 = vmatpush1.msra.mxu0 0.0
    %1040 = vmatprep.subr.mxu0 0.0
    %1041 = vmatpush1.msra.mxu0 0.0
    %1042 = vmatprep.subr.mxu0 0.0
    %1043 = vmatpush1.msra.mxu0 0.0
    %1044 = vmatprep.subr.mxu0 0.0
    %1045 = vmatpush1.msra.mxu0 0.0
    %1046 = vmatprep.subr.mxu0 0.0
    %1047 = vmatpush1.msra.mxu0 0.0
    %1048 = vmatprep.subr.mxu0 0.0
    %1049 = vmatpush1.msra.mxu0 0.0
    %1050 = vmatprep.subr.mxu0 0.0
    %1051 = vmatpush1.msra.mxu0 0.0
    %1052 = vmatprep.subr.mxu0 0.0
    %1053 = vmatpush1.msra.mxu0 0.0
    %1054 = vmatprep.subr.mxu0 0.0
    %1055 = vmatpush1.msra.mxu0 0.0
    %1056 = vmatprep.subr.mxu0 0.0
    %1057 = vmatpush1.msra.mxu0 0.0
    %1058 = vmatprep.mubr.f32.mxu0 0.0
    %1059 = vmatmul.mubr.f32.gmra.mrb[0].mxu0 %v992
    %v1060 = vpop.f32.mrb[0].mxu0
    %v1061 = vadd.f32 %v207, %v1060
    %v1062 = vpop.f32.mrb[0].mxu0
    %1063 = vdwg.mxu0
    %v1064 = vrot.slane %v1061, 4
    %v1065 = vadd.f32 %v1061, %v1064
    %v1066 = vrot.slane %v1065, 2
    %v1067 = vadd.f32 %v1065, %v1066
    %v1068 = vrot.slane %v1067, 1
    %v1069 = vadd.f32 %v1067, %v1068
    %v1070 = vmul.f32 %v1069, %v216
    %v1071 = vmul.f32 %v1061, %v1061
    %v1072 = vrot.slane %v1071, 4
    %v1073 = vadd.f32 %v1071, %v1072
    %v1074 = vrot.slane %v1073, 2
    %v1075 = vadd.f32 %v1073, %v1074
    %v1076 = vrot.slane %v1075, 1
    %v1077 = vadd.f32 %v1075, %v1076
    %v1078 = vmul.f32 %v1077, %v216
    %v1079 = vmul.f32 %v1070, %v1070
    %v1080 = vsub.f32 %v1078, %v1079
    %v1081 = vmax.f32 %v1080, 0.0
    %v1082 = vld [vmem:[#allocation6 + $0x6] sm:$0x1]
    %v1083 = vadd.f32 %v1081, 1e-05
    %v1084 = vrsqrt.pop %v1083
    %v1085 = vmul.f32 %v1082, %v1084
    %v1086 = vld [vmem:[#allocation6 + $0xf] sm:$0x1]
    %v1087 = vmul.f32 %v1070, %v1085
    %v1088 = vsub.f32 %v1086, %v1087
    %v1089 = vlaneseq
    %v1090 = vshrl.u32 %v1089, 7
    %v1091 = vsub.s32 0, %v1090
    %v1092 = vrot.slane %v1085, %v1091
    %v1093 = vmul.f32 %v1061, %v1092
    %v1094 = vlaneseq
    %v1095 = vshrl.u32 %v1094, 7
    %v1096 = vsub.s32 0, %v1095
    %v1097 = vrot.slane %v1088, %v1096
    %v1098 = vadd.f32 %v1093, %v1097
    %v1099 = vmax.f32 %v1098, 0.0
    %s1100 = scalar_lea.vmem [#allocation4], 256
    %v1101 = vld [vmem:[%s1100] sm:$0xff]
    %v1102 = vld [vmem:[%s1100 + $0x8] sm:$0xff]
    %v1103 = vld [vmem:[%s1100 + $0x10] sm:$0xff]
    %v1104 = vld [vmem:[%s1100 + $0x18] sm:$0xff]
    %v1106 = vsel %vm251, %v1099, 0
    %1108 = vmatprep.subr.mxu0 0.0
    %1109 = vmatpush1.msra.mxu0 %v1101
    %1110 = vmatprep.subr.mxu0 0.0
    %1111 = vmatpush1.msra.mxu0 %v1102
    %1112 = vmatprep.subr.mxu0 0.0
    %1113 = vmatpush1.msra.mxu0 %v1103
    %1114 = vmatprep.subr.mxu0 0.0
    %1115 = vmatpush1.msra.mxu0 %v1104
    %1116 = vmatprep.subr.mxu0 0.0
    %1117 = vmatpush1.msra.mxu0 0.0
    %1118 = vmatprep.subr.mxu0 0.0
    %1119 = vmatpush1.msra.mxu0 0.0
    %1120 = vmatprep.subr.mxu0 0.0
    %1121 = vmatpush1.msra.mxu0 0.0
    %1122 = vmatprep.subr.mxu0 0.0
    %1123 = vmatpush1.msra.mxu0 0.0
    %1124 = vmatprep.subr.mxu0 0.0
    %1125 = vmatpush1.msra.mxu0 0.0
    %1126 = vmatprep.subr.mxu0 0.0
    %1127 = vmatpush1.msra.mxu0 0.0
    %1128 = vmatprep.subr.mxu0 0.0
    %1129 = vmatpush1.msra.mxu0 0.0
    %1130 = vmatprep.subr.mxu0 0.0
    %1131 = vmatpush1.msra.mxu0 0.0
    %1132 = vmatprep.subr.mxu0 0.0
    %1133 = vmatpush1.msra.mxu0 0.0
    %1134 = vmatprep.subr.mxu0 0.0
    %1135 = vmatpush1.msra.mxu0 0.0
    %1136 = vmatprep.subr.mxu0 0.0
    %1137 = vmatpush1.msra.mxu0 0.0
    %1138 = vmatprep.subr.mxu0 0.0
    %1139 = vmatpush1.msra.mxu0 0.0
    %1140 = vmatprep.subr.mxu0 0.0
    %1141 = vmatpush1.msra.mxu0 0.0
    %1142 = vmatprep.subr.mxu0 0.0
    %1143 = vmatpush1.msra.mxu0 0.0
    %1144 = vmatprep.subr.mxu0 0.0
    %1145 = vmatpush1.msra.mxu0 0.0
    %1146 = vmatprep.subr.mxu0 0.0
    %1147 = vmatpush1.msra.mxu0 0.0
    %1148 = vmatprep.subr.mxu0 0.0
    %1149 = vmatpush1.msra.mxu0 0.0
    %1150 = vmatprep.subr.mxu0 0.0
    %1151 = vmatpush1.msra.mxu0 0.0
    %1152 = vmatprep.subr.mxu0 0.0
    %1153 = vmatpush1.msra.mxu0 0.0
    %1154 = vmatprep.subr.mxu0 0.0
    %1155 = vmatpush1.msra.mxu0 0.0
    %1156 = vmatprep.subr.mxu0 0.0
    %1157 = vmatpush1.msra.mxu0 0.0
    %1158 = vmatprep.subr.mxu0 0.0
    %1159 = vmatpush1.msra.mxu0 0.0
    %1160 = vmatprep.subr.mxu0 0.0
    %1161 = vmatpush1.msra.mxu0 0.0
    %1162 = vmatprep.subr.mxu0 0.0
    %1163 = vmatpush1.msra.mxu0 0.0
    %1164 = vmatprep.subr.mxu0 0.0
    %1165 = vmatpush1.msra.mxu0 0.0
    %1166 = vmatprep.subr.mxu0 0.0
    %1167 = vmatpush1.msra.mxu0 0.0
    %1168 = vmatprep.subr.mxu0 0.0
    %1169 = vmatpush1.msra.mxu0 0.0
    %1170 = vmatprep.subr.mxu0 0.0
    %1171 = vmatpush1.msra.mxu0 0.0
    %1172 = vmatprep.mubr.f32.mxu0 0.0
    %1173 = vmatmul.mubr.f32.gmra.mrb[0].mxu0 %v1106
    %v1174 = vpop.f32.mrb[0].mxu0
    %v1175 = vadd.f32 0.0, %v1174
    %v1176 = vpop.f32.mrb[0].mxu0
    %1177 = vdwg.mxu0
    %v1178 = vrot.slane %v1175, 4
    %v1179 = vadd.f32 %v1175, %v1178
    %v1180 = vrot.slane %v1179, 2
    %v1181 = vadd.f32 %v1179, %v1180
    %v1182 = vrot.slane %v1181, 1
    %v1183 = vadd.f32 %v1181, %v1182
    %v1184 = vmul.f32 %v1183, %v216
    %v1185 = vmul.f32 %v1175, %v1175
    %v1186 = vrot.slane %v1185, 4
    %v1187 = vadd.f32 %v1185, %v1186
    %v1188 = vrot.slane %v1187, 2
    %v1189 = vadd.f32 %v1187, %v1188
    %v1190 = vrot.slane %v1189, 1
    %v1191 = vadd.f32 %v1189, %v1190
    %v1192 = vmul.f32 %v1191, %v216
    %v1193 = vmul.f32 %v1184, %v1184
    %v1194 = vsub.f32 %v1192, %v1193
    %v1195 = vmax.f32 %v1194, 0.0
    %v1196 = vld [vmem:[#allocation6 + $0x7] sm:$0x1]
    %v1197 = vadd.f32 %v1195, 1e-05
    %v1198 = vrsqrt.pop %v1197
    %v1199 = vmul.f32 %v1196, %v1198
    %v1200 = vld [vmem:[#allocation6 + $0x10] sm:$0x1]
    %v1201 = vmul.f32 %v1184, %v1199
    %v1202 = vsub.f32 %v1200, %v1201
    %v1203 = vlaneseq
    %v1204 = vshrl.u32 %v1203, 7
    %v1205 = vsub.s32 0, %v1204
    %v1206 = vrot.slane %v1199, %v1205
    %v1207 = vmul.f32 %v1175, %v1206
    %v1208 = vlaneseq
    %v1209 = vshrl.u32 %v1208, 7
    %v1210 = vsub.s32 0, %v1209
    %v1211 = vrot.slane %v1202, %v1210
    %v1212 = vadd.f32 %v1207, %v1211
    %v1213 = vmax.f32 %v1212, 0.0
    %s1214 = scalar_lea.vmem [#allocation4], 288
    %v1215 = vld [vmem:[%s1214] sm:$0xff]
    %v1216 = vld [vmem:[%s1214 + $0x8] sm:$0xff]
    %v1217 = vld [vmem:[%s1214 + $0x10] sm:$0xff]
    %v1218 = vld [vmem:[%s1214 + $0x18] sm:$0xff]
    %v1220 = vsel %vm251, %v1213, 0
    %1222 = vmatprep.subr.mxu0 0.0
    %1223 = vmatpush1.msra.mxu0 %v1215
    %1224 = vmatprep.subr.mxu0 0.0
    %1225 = vmatpush1.msra.mxu0 %v1216
    %1226 = vmatprep.subr.mxu0 0.0
    %1227 = vmatpush1.msra.mxu0 %v1217
    %1228 = vmatprep.subr.mxu0 0.0
    %1229 = vmatpush1.msra.mxu0 %v1218
    %1230 = vmatprep.subr.mxu0 0.0
    %1231 = vmatpush1.msra.mxu0 0.0
    %1232 = vmatprep.subr.mxu0 0.0
    %1233 = vmatpush1.msra.mxu0 0.0
    %1234 = vmatprep.subr.mxu0 0.0
    %1235 = vmatpush1.msra.mxu0 0.0
    %1236 = vmatprep.subr.mxu0 0.0
    %1237 = vmatpush1.msra.mxu0 0.0
    %1238 = vmatprep.subr.mxu0 0.0
    %1239 = vmatpush1.msra.mxu0 0.0
    %1240 = vmatprep.subr.mxu0 0.0
    %1241 = vmatpush1.msra.mxu0 0.0
    %1242 = vmatprep.subr.mxu0 0.0
    %1243 = vmatpush1.msra.mxu0 0.0
    %1244 = vmatprep.subr.mxu0 0.0
    %1245 = vmatpush1.msra.mxu0 0.0
    %1246 = vmatprep.subr.mxu0 0.0
    %1247 = vmatpush1.msra.mxu0 0.0
    %1248 = vmatprep.subr.mxu0 0.0
    %1249 = vmatpush1.msra.mxu0 0.0
    %1250 = vmatprep.subr.mxu0 0.0
    %1251 = vmatpush1.msra.mxu0 0.0
    %1252 = vmatprep.subr.mxu0 0.0
    %1253 = vmatpush1.msra.mxu0 0.0
    %1254 = vmatprep.subr.mxu0 0.0
    %1255 = vmatpush1.msra.mxu0 0.0
    %1256 = vmatprep.subr.mxu0 0.0
    %1257 = vmatpush1.msra.mxu0 0.0
    %1258 = vmatprep.subr.mxu0 0.0
    %1259 = vmatpush1.msra.mxu0 0.0
    %1260 = vmatprep.subr.mxu0 0.0
    %1261 = vmatpush1.msra.mxu0 0.0
    %1262 = vmatprep.subr.mxu0 0.0
    %1263 = vmatpush1.msra.mxu0 0.0
    %1264 = vmatprep.subr.mxu0 0.0
    %1265 = vmatpush1.msra.mxu0 0.0
    %1266 = vmatprep.subr.mxu0 0.0
    %1267 = vmatpush1.msra.mxu0 0.0
    %1268 = vmatprep.subr.mxu0 0.0
    %1269 = vmatpush1.msra.mxu0 0.0
    %1270 = vmatprep.subr.mxu0 0.0
    %1271 = vmatpush1.msra.mxu0 0.0
    %1272 = vmatprep.subr.mxu0 0.0
    %1273 = vmatpush1.msra.mxu0 0.0
    %1274 = vmatprep.subr.mxu0 0.0
    %1275 = vmatpush1.msra.mxu0 0.0
    %1276 = vmatprep.subr.mxu0 0.0
    %1277 = vmatpush1.msra.mxu0 0.0
    %1278 = vmatprep.subr.mxu0 0.0
    %1279 = vmatpush1.msra.mxu0 0.0
    %1280 = vmatprep.subr.mxu0 0.0
    %1281 = vmatpush1.msra.mxu0 0.0
    %1282 = vmatprep.subr.mxu0 0.0
    %1283 = vmatpush1.msra.mxu0 0.0
    %1284 = vmatprep.subr.mxu0 0.0
    %1285 = vmatpush1.msra.mxu0 0.0
    %1286 = vmatprep.mubr.f32.mxu0 0.0
    %1287 = vmatmul.mubr.f32.gmra.mrb[0].mxu0 %v1220
    %v1288 = vpop.f32.mrb[0].mxu0
    %v1289 = vadd.f32 0.0, %v1288
    %v1290 = vpop.f32.mrb[0].mxu0
    %1291 = vdwg.mxu0
    %v1292 = vrot.slane %v1289, 4
    %v1293 = vadd.f32 %v1289, %v1292
    %v1294 = vrot.slane %v1293, 2
    %v1295 = vadd.f32 %v1293, %v1294
    %v1296 = vrot.slane %v1295, 1
    %v1297 = vadd.f32 %v1295, %v1296
    %v1298 = vmul.f32 %v1297, %v216
    %v1299 = vmul.f32 %v1289, %v1289
    %v1300 = vrot.slane %v1299, 4
    %v1301 = vadd.f32 %v1299, %v1300
    %v1302 = vrot.slane %v1301, 2
    %v1303 = vadd.f32 %v1301, %v1302
    %v1304 = vrot.slane %v1303, 1
    %v1305 = vadd.f32 %v1303, %v1304
    %v1306 = vmul.f32 %v1305, %v216
    %v1307 = vmul.f32 %v1298, %v1298
    %v1308 = vsub.f32 %v1306, %v1307
    %v1309 = vmax.f32 %v1308, 0.0
    %v1310 = vld [vmem:[#allocation6 + $0x8] sm:$0x1]
    %v1311 = vadd.f32 %v1309, 1e-05
    %v1312 = vrsqrt.pop %v1311
    %v1313 = vmul.f32 %v1310, %v1312
    %v1314 = vld [vmem:[#allocation6 + $0x11] sm:$0x1]
    %v1315 = vmul.f32 %v1298, %v1313
    %v1316 = vsub.f32 %v1314, %v1315
    %v1317 = vlaneseq
    %v1318 = vshrl.u32 %v1317, 7
    %v1319 = vsub.s32 0, %v1318
    %v1320 = vrot.slane %v1313, %v1319
    %v1321 = vmul.f32 %v1289, %v1320
    %v1322 = vlaneseq
    %v1323 = vshrl.u32 %v1322, 7
    %v1324 = vsub.s32 0, %v1323
    %v1325 = vrot.slane %v1316, %v1324
    %v1326 = vadd.f32 %v1321, %v1325
    %v1327 = vmax.f32 %v1326, 0.0
    %s1328 = scalar_lea.vmem [#allocation4], 320
    %v1329 = vld [vmem:[%s1328] sm:$0xff]
    %v1330 = vld [vmem:[%s1328 + $0x8] sm:$0xff]
    %v1331 = vld [vmem:[%s1328 + $0x10] sm:$0xff]
    %v1332 = vld [vmem:[%s1328 + $0x18] sm:$0xff]
    %v1333 = vld [vmem:[#allocation6 + $0x14] sm:$0x1]
    %v1334 = vlaneseq
    %v1335 = vshrl.u32 %v1334, 7
    %v1336 = vsub.s32 0, %v1335
    %v1337 = vrot.slane %v1333, %v1336
    %v1339 = vsel %vm251, %v1327, 0
    %1341 = vmatprep.subr.mxu0 0.0
    %1342 = vmatpush1.msra.mxu0 %v1329
    %1343 = vmatprep.subr.mxu0 0.0
    %1344 = vmatpush1.msra.mxu0 %v1330
    %1345 = vmatprep.subr.mxu0 0.0
    %1346 = vmatpush1.msra.mxu0 %v1331
    %1347 = vmatprep.subr.mxu0 0.0
    %1348 = vmatpush1.msra.mxu0 %v1332
    %1349 = vmatprep.subr.mxu0 0.0
    %1350 = vmatpush1.msra.mxu0 0.0
    %1351 = vmatprep.subr.mxu0 0.0
    %1352 = vmatpush1.msra.mxu0 0.0
    %1353 = vmatprep.subr.mxu0 0.0
    %1354 = vmatpush1.msra.mxu0 0.0
    %1355 = vmatprep.subr.mxu0 0.0
    %1356 = vmatpush1.msra.mxu0 0.0
    %1357 = vmatprep.subr.mxu0 0.0
    %1358 = vmatpush1.msra.mxu0 0.0
    %1359 = vmatprep.subr.mxu0 0.0
    %1360 = vmatpush1.msra.mxu0 0.0
    %1361 = vmatprep.subr.mxu0 0.0
    %1362 = vmatpush1.msra.mxu0 0.0
    %1363 = vmatprep.subr.mxu0 0.0
    %1364 = vmatpush1.msra.mxu0 0.0
    %1365 = vmatprep.subr.mxu0 0.0
    %1366 = vmatpush1.msra.mxu0 0.0
    %1367 = vmatprep.subr.mxu0 0.0
    %1368 = vmatpush1.msra.mxu0 0.0
    %1369 = vmatprep.subr.mxu0 0.0
    %1370 = vmatpush1.msra.mxu0 0.0
    %1371 = vmatprep.subr.mxu0 0.0
    %1372 = vmatpush1.msra.mxu0 0.0
    %1373 = vmatprep.subr.mxu0 0.0
    %1374 = vmatpush1.msra.mxu0 0.0
    %1375 = vmatprep.subr.mxu0 0.0
    %1376 = vmatpush1.msra.mxu0 0.0
    %1377 = vmatprep.subr.mxu0 0.0
    %1378 = vmatpush1.msra.mxu0 0.0
    %1379 = vmatprep.subr.mxu0 0.0
    %1380 = vmatpush1.msra.mxu0 0.0
    %1381 = vmatprep.subr.mxu0 0.0
    %1382 = vmatpush1.msra.mxu0 0.0
    %1383 = vmatprep.subr.mxu0 0.0
    %1384 = vmatpush1.msra.mxu0 0.0
    %1385 = vmatprep.subr.mxu0 0.0
    %1386 = vmatpush1.msra.mxu0 0.0
    %1387 = vmatprep.subr.mxu0 0.0
    %1388 = vmatpush1.msra.mxu0 0.0
    %1389 = vmatprep.subr.mxu0 0.0
    %1390 = vmatpush1.msra.mxu0 0.0
    %1391 = vmatprep.subr.mxu0 0.0
    %1392 = vmatpush1.msra.mxu0 0.0
    %1393 = vmatprep.subr.mxu0 0.0
    %1394 = vmatpush1.msra.mxu0 0.0
    %1395 = vmatprep.subr.mxu0 0.0
    %1396 = vmatpush1.msra.mxu0 0.0
    %1397 = vmatprep.subr.mxu0 0.0
    %1398 = vmatpush1.msra.mxu0 0.0
    %1399 = vmatprep.subr.mxu0 0.0
    %1400 = vmatpush1.msra.mxu0 0.0
    %1401 = vmatprep.subr.mxu0 0.0
    %1402 = vmatpush1.msra.mxu0 0.0
    %1403 = vmatprep.subr.mxu0 0.0
    %1404 = vmatpush1.msra.mxu0 0.0
    %1405 = vmatprep.mubr.f32.mxu0 0.0
    %1406 = vmatmul.mubr.f32.gmra.mrb[0].mxu0 %v1339
    %v1407 = vpop.f32.mrb[0].mxu0
    %v1408 = vadd.f32 %v1337, %v1407
    %v1409 = vpop.f32.mrb[0].mxu0
    %1410 = vdwg.mxu0
    %s1411 = scalar_lea.vmem %s4, 16
    %1412 = vst [vmem:[%s1411] sm:$0xff] %v1408
    // Predicated region
    $region30: #{net_forward.1} parent=1 // pred_check
      _
    $region31: #{net_forward.1} parent=1 // pred_check_branch
      %1414 = sbr.rel (0) target = $region33
    $region32: #{net_forward.1} parent=1 // pred_region
      _
    $region33: #{net_forward.1} parent=1 // pred_fallthru
      _
    // Predicated region
    $region34: #{net_forward.1} parent=1 // pred_check
      _
    $region35: #{net_forward.1} parent=1 // pred_check_branch
      %1416 = sbr.rel (0) target = $region37
    $region36: #{net_forward.1} parent=1 // pred_region
      _
    $region37: #{net_forward.1} parent=1 // pred_fallthru
      _
    %1417 = vsyncpa [#allocation3], 1
    %1418 = vsyncpa [#allocation5], 1

</llo_original>
